<compile_context>
chip_gen: v7x
topology: tpu7x:2x2x1
jax: 0.10.0
libtpu: 0.0.40
codegen_flags: <defaults>
</compile_context>

<pallas_src>
import functools

import jax
import jax.numpy as jnp
from jax.experimental import pallas as pl
from jax.experimental.pallas import tpu as pltpu

LANE = 128


def _round_up(x, m):
    return ((x + m - 1) // m) * m


def _pick_block_rows(H, W, Cin_p, Cmid_p, out_itemsize, budget=6 * 1024 * 1024):
    """Largest divisor of H whose per-step working set fits `budget` bytes.

    A row block must either cover all of H or have Hb*W divisible by 8 so the
    flattened (rows*W, C) output block honours the (8, 128) layout contract.
    """
    def step_bytes(hb):
        hbw, l = hb * W, (hb + 2) * W
        return (2 * l * Cin_p * 2                   # x block, double-buffered, bf16
                + 2 * hbw * Cin_p * out_itemsize    # out block, double-buffered
                + l * Cmid_p * 4                    # h1 (f32)
                + 2 * hbw * Cmid_p * 4              # conv2 accumulator + tap transient
                + hbw * Cin_p * 4)                  # conv3 result (f32)

    divisors = [d for d in range(H, 0, -1)
                if H % d == 0 and (d == H or (d * W) % 8 == 0)]
    for d in divisors:
        if step_bytes(d) <= budget:
            return d
    return divisors[-1]


def bottleneck_kernel(x_ref, w1_ref, w2_ref, w3_ref, o_ref):
    """One (batch, row-block) grid step.

    x_ref:  ((Hb+2)*W, Cin_p)   bf16  block rows + 1 halo row above/below
    w1_ref: (Cin_p, Cmid_p)     bf16  conv1 1x1
    w2_ref: (9, Cmid_p, Cmid_p) bf16  conv2 3x3 taps, index k = 3*kh + kw
    w3_ref: (Cmid_p, Cin_p)     bf16  conv3 1x1 (Cout == Cin == 4*Cmid)
    o_ref:  (Hb*W, Cin_p)       f32/bf16 output rows (no halo), lane-dense
    """
    L, _ = x_ref.shape
    Cmid_p = w1_ref.shape[1]
    HbW = o_ref.shape[0]
    W = (L - HbW) // 2                      # static: L = (Hb+2)*W, HbW = Hb*W

    # conv1: 1x1 conv == per-pixel matmul (bf16 in, f32 acc) + ReLU, recomputed
    # on the two halo rows too (cheap, avoids any cross-block communication).
    # Zero halo rows at the image border reproduce conv2's zero padding.
    h1 = jnp.maximum(
        jnp.dot(x_ref[...], w1_ref[...], preferred_element_type=jnp.float32),
        0.0)

    # conv2: 3x3, stride 1, pad 1 as 9 accumulated per-tap MXU dots — no
    # im2col slab.  Vertical taps are aligned row slices of the halo'd h1;
    # horizontal taps are a +-1 sublane roll (XLU slot) with out-of-image
    # columns masked.  Rolls stay f32; each tap is cast to bf16 only for its
    # dot, so nothing wide stays live.
    col = jax.lax.broadcasted_iota(jnp.int32, (HbW, 1), 0) % W
    not_left = col > 0                      # column j-1 exists
    not_right = col < (W - 1)               # column j+1 exists

    acc = jnp.zeros((HbW, Cmid_p), jnp.float32)
    for kh in range(3):
        base = h1[kh * W:kh * W + HbW]      # rows (i + kh) of the halo'd h1
        for kw in range(3):
            if kw == 0:
                tap = jnp.where(not_left, pltpu.roll(base, shift=1, axis=0), 0.0)
            elif kw == 2:
                tap = jnp.where(not_right,
                                pltpu.roll(base, shift=HbW - 1, axis=0), 0.0)
            else:
                tap = base
            acc = acc + jnp.dot(tap.astype(jnp.bfloat16), w2_ref[3 * kh + kw],
                                preferred_element_type=jnp.float32)

    h2 = jnp.maximum(acc, 0.0).astype(jnp.bfloat16)

    # conv3 + residual + ReLU.  The residual is re-read from the bf16 input
    # block here (center rows only) instead of keeping an f32 copy alive.
    h3 = jnp.dot(h2, w3_ref[...], preferred_element_type=jnp.float32)
    x_res = x_ref[pl.ds(W, HbW), :].astype(jnp.float32)
    o_ref[...] = jnp.maximum(h3 + x_res, 0.0).astype(o_ref.dtype)


@functools.partial(jax.jit, static_argnames=("block_rows", "out_dtype"))
def bottleneck_forward(x_nchw, w1, w2, w3, *, block_rows=None,
                       out_dtype=jnp.float32):
    """x_nchw: (N, Cin, H, W) f32.  w1: (Cin, Cmid); w2: (3, 3, Cmid, Cmid) in
    (kh, kw, cin, cout) layout; w3: (Cmid, Cin).  Returns (N, Cin, H, W).

    out_dtype=jnp.bfloat16 halves the HBM writeback (add/ReLU stay f32) at the
    cost of bf16 rounding on the final result.
    """
    N, Cin, H, W = x_nchw.shape
    Cmid = w1.shape[1]
    assert w1.shape == (Cin, Cmid)
    assert w2.shape == (3, 3, Cmid, Cmid)
    assert w3.shape == (Cmid, Cin) and Cin == 4 * Cmid, (
        "downsample=None: residual add requires in_channels == 4*out_channels")

    Cin_p = _round_up(Cin, LANE)
    Cmid_p = _round_up(Cmid, LANE)
    out_isz = jnp.dtype(out_dtype).itemsize

    Hb = block_rows if block_rows is not None else _pick_block_rows(
        H, W, Cin_p, Cmid_p, out_isz)
    assert H % Hb == 0 and (Hb == H or (Hb * W) % 8 == 0), (Hb, H, W)
    nblk = H // Hb
    HbW, L = Hb * W, (Hb + 2) * W

    # NHWC, channels lane-padded, one zero halo row above/below the image.
    x = jnp.transpose(x_nchw, (0, 2, 3, 1))
    x = jnp.pad(x, ((0, 0), (1, 1), (0, 0), (0, Cin_p - Cin)))
    x = x.astype(jnp.bfloat16)
    # Overlapping (Hb+2)-row halo windows, pre-flattened to (rows*W, C) so the
    # kernel never reshapes in VMEM (free even when W is 28/14/7).
    ridx = jnp.arange(nblk)[:, None] * Hb + jnp.arange(Hb + 2)[None, :]
    x_halo = x[:, ridx].reshape(N, nblk, L, Cin_p)

    w1_p = jnp.pad(w1, ((0, Cin_p - Cin),
                        (0, Cmid_p - Cmid))).astype(jnp.bfloat16)
    w2_p = jnp.pad(w2, ((0, 0), (0, 0), (0, Cmid_p - Cmid),
                        (0, Cmid_p - Cmid)))
    w2_p = w2_p.reshape(9, Cmid_p, Cmid_p).astype(jnp.bfloat16)
    w3_p = jnp.pad(w3, ((0, Cmid_p - Cmid),
                        (0, Cin_p - Cin))).astype(jnp.bfloat16)

    weight_bytes = 2 * (w1_p.size + w2_p.size + w3_p.size)
    flops = 2 * N * nblk * (L * Cin_p * Cmid_p
                            + HbW * 9 * Cmid_p * Cmid_p
                            + HbW * Cmid_p * Cin_p)
    bytes_accessed = (x_halo.size * 2 + weight_bytes
                      + N * H * W * Cin_p * out_isz)

    # Explicit scoped-VMEM budget: defaults (16 MiB v5e / 32 MiB v6e+) are too
    # small for large row blocks; cap at 48 MiB to stay well under v7x's
    # 64 MiB physical VMEM.
    est = (2 * L * Cin_p * 2 + 2 * HbW * Cin_p * out_isz + L * Cmid_p * 4
           + 2 * HbW * Cmid_p * 4 + HbW * Cin_p * 4 + 2 * weight_bytes)
    vmem_limit = int(min(48 * 1024 * 1024, max(32 * 1024 * 1024, 2 * est)))

    out = pl.pallas_call(
        bottleneck_kernel,
        out_shape=jax.ShapeDtypeStruct((N, H * W, Cin_p), out_dtype),
        grid_spec=pltpu.PrefetchScalarGridSpec(
            num_scalar_prefetch=0,
            grid=(N, nblk),
            in_specs=[
                pl.BlockSpec((None, None, L, Cin_p), lambda n, r: (n, r, 0, 0)),
                pl.BlockSpec((Cin_p, Cmid_p), lambda n, r: (0, 0)),
                pl.BlockSpec((9, Cmid_p, Cmid_p), lambda n, r: (0, 0, 0)),
                pl.BlockSpec((Cmid_p, Cin_p), lambda n, r: (0, 0)),
            ],
            out_specs=pl.BlockSpec((None, HbW, Cin_p), lambda n, r: (n, r, 0)),
        ),
        compiler_params=pltpu.CompilerParams(
            dimension_semantics=("parallel", "parallel"),
            vmem_limit_bytes=vmem_limit),
        cost_estimate=pl.CostEstimate(
            flops=flops, transcendentals=0, bytes_accessed=bytes_accessed),
    )(x_halo, w1_p, w2_p, w3_p)

    out = out[..., :Cin].reshape(N, H, W, Cin)     # drop channel (lane) padding
    return jnp.transpose(out, (0, 3, 1, 2))        # back to NCHW


def bottleneck_reference(x_nchw, w1, w2, w3):
    """Pure-JAX NHWC reference with the same bf16-operand / f32-accumulate
    precision as the kernel (bn layers intentionally absent, as in forward())."""
    bf = jnp.bfloat16
    dn = ("NHWC", "HWIO", "NHWC")
    x = jnp.transpose(x_nchw, (0, 2, 3, 1)).astype(bf)
    h1 = jax.nn.relu(jax.lax.conv_general_dilated(
        x, w1.astype(bf)[None, None], (1, 1), "VALID", dimension_numbers=dn,
        preferred_element_type=jnp.float32)).astype(bf)
    h2 = jax.nn.relu(jax.lax.conv_general_dilated(
        h1, w2.astype(bf), (1, 1), ((1, 1), (1, 1)), dimension_numbers=dn,
        preferred_element_type=jnp.float32)).astype(bf)
    h3 = jax.lax.conv_general_dilated(
        h2, w3.astype(bf)[None, None], (1, 1), "VALID", dimension_numbers=dn,
        preferred_element_type=jnp.float32)
    out = jax.nn.relu(h3 + x.astype(jnp.float32))
    return jnp.transpose(out, (0, 3, 1, 2))


if __name__ == "__main__":
    # Small shapes consistent with the module: downsample=None means the
    # residual add requires in_channels == 4 * out_channels.
    out_channels = 8
    in_channels = 4 * out_channels      # 32
    N, H, W = 2, 16, 16

    key = jax.random.PRNGKey(0)
    kx, k1, k2, k3 = jax.random.split(key, 4)
    x = jax.random.normal(kx, (N, in_channels, H, W), jnp.float32)
    # Kernel weight layouts:
    #   w1 (Cin, Cmid)        <-> torch conv1.weight (Cmid, Cin, 1, 1)
    #   w2 (3, 3, Cmid, Cmid) <-> torch conv2.weight (Cmid, Cmid, 3, 3)
    #   w3 (Cmid, Cout)       <-> torch conv3.weight (Cout, Cmid, 1, 1)
    w1 = 0.1 * jax.random.normal(k1, (in_channels, out_channels), jnp.float32)
    w2 = 0.1 * jax.random.normal(k2, (3, 3, out_channels, out_channels),
                                 jnp.float32)
    w3 = 0.1 * jax.random.normal(k3, (out_channels, in_channels), jnp.float32)

    # block_rows=8 -> grid=(N, 2): exercises the row-block + halo path.
    y = jax.block_until_ready(bottleneck_forward(x, w1, w2, w3, block_rows=8))
    y_ref = jax.block_until_ready(bottleneck_reference(x, w1, w2, w3))

    assert y.shape == (N, in_channels, H, W)
    max_err = float(jnp.max(jnp.abs(y - y_ref)))
    assert jnp.allclose(y, y_ref, atol=1e-2, rtol=1e-2), max_err
    # TODO(synk): bn1/bn2/bn3 and downsample are defined in __init__ but never
    # invoked in the PyTorch forward(), so they are intentionally omitted.
    print("KERNEL_OK")
</pallas_src>

<mosaic_0001>
module attributes {stable_mosaic.version = 11 : i64} {
  func.func @bottleneck_kernel(%arg0: i32, %arg1: i32, %arg2: memref<1x1x160x128xbf16, #tpu.memory_space<vmem>>, %arg3: memref<128x128xbf16, #tpu.memory_space<vmem>>, %arg4: memref<9x128x128xbf16, #tpu.memory_space<vmem>>, %arg5: memref<128x128xbf16, #tpu.memory_space<vmem>>, %arg6: memref<1x128x128xf32, #tpu.memory_space<vmem>>) attributes {dimension_semantics = [#tpu.dimension_semantics<parallel>, #tpu.dimension_semantics<parallel>], iteration_bounds = array<i64: 2, 2>, scalar_prefetch = 0 : i64, scratch_operands = 0 : i64, tpu.core_type = #tpu.core_type<tc>, window_params = [{transform_indices = @transform_0, window_bounds = array<i64: 1, 1, 160, 128>}, {pipeline_mode = #tpu.pipeline_mode<synchronous>, transform_indices = @transform_1, window_bounds = array<i64: 128, 128>}, {pipeline_mode = #tpu.pipeline_mode<synchronous>, transform_indices = @transform_2, window_bounds = array<i64: 9, 128, 128>}, {pipeline_mode = #tpu.pipeline_mode<synchronous>, transform_indices = @transform_3, window_bounds = array<i64: 128, 128>}, {transform_indices = @transform_4, window_bounds = array<i64: 1, 128, 128>}]} {
    %c0 = arith.constant 0 : index
    %c0_0 = arith.constant 0 : index
    %c0_1 = arith.constant 0 : index
    %c0_2 = arith.constant 0 : index
    %0 = vector.load %arg2[%c0, %c0_0, %c0_1, %c0_2] : memref<1x1x160x128xbf16, #tpu.memory_space<vmem>>, vector<1x1x160x128xbf16>
    %1 = vector.shape_cast %0 : vector<1x1x160x128xbf16> to vector<160x128xbf16>
    %c0_3 = arith.constant 0 : index
    %c0_4 = arith.constant 0 : index
    %2 = vector.load %arg3[%c0_3, %c0_4] : memref<128x128xbf16, #tpu.memory_space<vmem>>, vector<128x128xbf16>
    %cst = arith.constant dense<0.000000e+00> : vector<160x128xf32>
    %3 = tpu.matmul %1, %2, %cst {dimension_numbers = #tpu.dot_dimension_numbers<[1], [0], [0], [1], [0, 0, 1, 1], [], []>} : vector<160x128xbf16>, vector<128x128xbf16>, vector<160x128xf32> -> vector<160x128xf32>
    %cst_5 = arith.constant 0.000000e+00 : f32
    %4 = vector.broadcast %cst_5 : f32 to vector<160x128xf32>
    %5 = arith.maximumf %3, %4 : vector<160x128xf32>
    %6 = tpu.iota {dimensions = array<i32: 0>} : vector<128x1xi32>
    %c16_i32 = arith.constant 16 : i32
    %c0_i32 = arith.constant 0 : i32
    %7 = arith.cmpi eq, %c16_i32, %c0_i32 : i32
    %c1_i32 = arith.constant 1 : i32
    %8 = arith.select %7, %c1_i32, %c16_i32 : i32
    %9 = vector.broadcast %8 : i32 to vector<128x1xi32>
    %10 = arith.remsi %6, %9 : vector<128x1xi32>
    %c0_i32_6 = arith.constant 0 : i32
    %11 = vector.broadcast %c0_i32_6 : i32 to vector<128x1xi32>
    %12 = arith.cmpi ne, %10, %11 : vector<128x1xi32>
    %c0_i32_7 = arith.constant 0 : i32
    %13 = vector.broadcast %c0_i32_7 : i32 to vector<128x1xi32>
    %14 = arith.cmpi slt, %10, %13 : vector<128x1xi32>
    %c0_i32_8 = arith.constant 0 : i32
    %15 = arith.cmpi slt, %8, %c0_i32_8 : i32
    %16 = vector.broadcast %15 : i1 to vector<128x1xi1>
    %17 = vector.broadcast %16 : vector<128x1xi1> to vector<128x1xi1>
    %18 = arith.xori %14, %17 : vector<128x1xi1>
    %19 = arith.andi %18, %12 : vector<128x1xi1>
    %20 = vector.broadcast %8 : i32 to vector<128x1xi32>
    %21 = arith.addi %10, %20 : vector<128x1xi32>
    %22 = arith.select %19, %21, %10 : vector<128x1xi1>, vector<128x1xi32>
    %c0_i32_9 = arith.constant 0 : i32
    %23 = vector.broadcast %c0_i32_9 : i32 to vector<128x1xi32>
    %24 = arith.cmpi sgt, %22, %23 : vector<128x1xi32>
    %c15_i32 = arith.constant 15 : i32
    %25 = vector.broadcast %c15_i32 : i32 to vector<128x1xi32>
    %26 = arith.cmpi slt, %22, %25 : vector<128x1xi32>
    %cst_10 = arith.constant 0.000000e+00 : f32
    %27 = vector.broadcast %cst_10 : f32 to vector<128x128xf32>
    %28 = vector.extract_strided_slice %5 {offsets = [0, 0], sizes = [128, 128], strides = [1, 1]} : vector<160x128xf32> to vector<128x128xf32>
    %c1_i32_11 = arith.constant 1 : i32
    %29 = tpu.dynamic_rotate %28 by %c1_i32_11 dim 0 : vector<128x128xf32>, i32 -> vector<128x128xf32>
    %cst_12 = arith.constant 0.000000e+00 : f32
    %30 = vector.shape_cast %24 : vector<128x1xi1> to vector<128x1xi1>
    %31 = vector.broadcast %30 : vector<128x1xi1> to vector<128x128xi1>
    %32 = vector.broadcast %cst_12 : f32 to vector<128x128xf32>
    %33 = arith.select %31, %29, %32 : vector<128x128xi1>, vector<128x128xf32>
    %34 = arith.truncf %33 : vector<128x128xf32> to vector<128x128xbf16>
    %c0_13 = arith.constant 0 : index
    %c0_14 = arith.constant 0 : index
    %c0_15 = arith.constant 0 : index
    %35 = vector.load %arg4[%c0_13, %c0_14, %c0_15] : memref<9x128x128xbf16, #tpu.memory_space<vmem>>, vector<1x128x128xbf16>
    %36 = vector.shape_cast %35 : vector<1x128x128xbf16> to vector<128x128xbf16>
    %cst_16 = arith.constant dense<0.000000e+00> : vector<128x128xf32>
    %37 = tpu.matmul %34, %36, %cst_16 {dimension_numbers = #tpu.dot_dimension_numbers<[1], [0], [0], [1], [0, 0, 1, 1], [], []>} : vector<128x128xbf16>, vector<128x128xbf16>, vector<128x128xf32> -> vector<128x128xf32>
    %38 = arith.addf %27, %37 : vector<128x128xf32>
    %39 = arith.truncf %28 : vector<128x128xf32> to vector<128x128xbf16>
    %c1 = arith.constant 1 : index
    %c0_17 = arith.constant 0 : index
    %c0_18 = arith.constant 0 : index
    %40 = vector.load %arg4[%c1, %c0_17, %c0_18] : memref<9x128x128xbf16, #tpu.memory_space<vmem>>, vector<1x128x128xbf16>
    %41 = vector.shape_cast %40 : vector<1x128x128xbf16> to vector<128x128xbf16>
    %cst_19 = arith.constant dense<0.000000e+00> : vector<128x128xf32>
    %42 = tpu.matmul %39, %41, %cst_19 {dimension_numbers = #tpu.dot_dimension_numbers<[1], [0], [0], [1], [0, 0, 1, 1], [], []>} : vector<128x128xbf16>, vector<128x128xbf16>, vector<128x128xf32> -> vector<128x128xf32>
    %43 = arith.addf %38, %42 : vector<128x128xf32>
    %c127_i32 = arith.constant 127 : i32
    %44 = tpu.dynamic_rotate %28 by %c127_i32 dim 0 : vector<128x128xf32>, i32 -> vector<128x128xf32>
    %cst_20 = arith.constant 0.000000e+00 : f32
    %45 = vector.shape_cast %26 : vector<128x1xi1> to vector<128x1xi1>
    %46 = vector.broadcast %45 : vector<128x1xi1> to vector<128x128xi1>
    %47 = vector.broadcast %cst_20 : f32 to vector<128x128xf32>
    %48 = arith.select %46, %44, %47 : vector<128x128xi1>, vector<128x128xf32>
    %49 = arith.truncf %48 : vector<128x128xf32> to vector<128x128xbf16>
    %c2 = arith.constant 2 : index
    %c0_21 = arith.constant 0 : index
    %c0_22 = arith.constant 0 : index
    %50 = vector.load %arg4[%c2, %c0_21, %c0_22] : memref<9x128x128xbf16, #tpu.memory_space<vmem>>, vector<1x128x128xbf16>
    %51 = vector.shape_cast %50 : vector<1x128x128xbf16> to vector<128x128xbf16>
    %cst_23 = arith.constant dense<0.000000e+00> : vector<128x128xf32>
    %52 = tpu.matmul %49, %51, %cst_23 {dimension_numbers = #tpu.dot_dimension_numbers<[1], [0], [0], [1], [0, 0, 1, 1], [], []>} : vector<128x128xbf16>, vector<128x128xbf16>, vector<128x128xf32> -> vector<128x128xf32>
    %53 = arith.addf %43, %52 : vector<128x128xf32>
    %54 = vector.extract_strided_slice %5 {offsets = [16, 0], sizes = [128, 128], strides = [1, 1]} : vector<160x128xf32> to vector<128x128xf32>
    %c1_i32_24 = arith.constant 1 : i32
    %55 = tpu.dynamic_rotate %54 by %c1_i32_24 dim 0 : vector<128x128xf32>, i32 -> vector<128x128xf32>
    %cst_25 = arith.constant 0.000000e+00 : f32
    %56 = vector.shape_cast %24 : vector<128x1xi1> to vector<128x1xi1>
    %57 = vector.broadcast %56 : vector<128x1xi1> to vector<128x128xi1>
    %58 = vector.broadcast %cst_25 : f32 to vector<128x128xf32>
    %59 = arith.select %57, %55, %58 : vector<128x128xi1>, vector<128x128xf32>
    %60 = arith.truncf %59 : vector<128x128xf32> to vector<128x128xbf16>
    %c3 = arith.constant 3 : index
    %c0_26 = arith.constant 0 : index
    %c0_27 = arith.constant 0 : index
    %61 = vector.load %arg4[%c3, %c0_26, %c0_27] : memref<9x128x128xbf16, #tpu.memory_space<vmem>>, vector<1x128x128xbf16>
    %62 = vector.shape_cast %61 : vector<1x128x128xbf16> to vector<128x128xbf16>
    %cst_28 = arith.constant dense<0.000000e+00> : vector<128x128xf32>
    %63 = tpu.matmul %60, %62, %cst_28 {dimension_numbers = #tpu.dot_dimension_numbers<[1], [0], [0], [1], [0, 0, 1, 1], [], []>} : vector<128x128xbf16>, vector<128x128xbf16>, vector<128x128xf32> -> vector<128x128xf32>
    %64 = arith.addf %53, %63 : vector<128x128xf32>
    %65 = arith.truncf %54 : vector<128x128xf32> to vector<128x128xbf16>
    %c4 = arith.constant 4 : index
    %c0_29 = arith.constant 0 : index
    %c0_30 = arith.constant 0 : index
    %66 = vector.load %arg4[%c4, %c0_29, %c0_30] : memref<9x128x128xbf16, #tpu.memory_space<vmem>>, vector<1x128x128xbf16>
    %67 = vector.shape_cast %66 : vector<1x128x128xbf16> to vector<128x128xbf16>
    %cst_31 = arith.constant dense<0.000000e+00> : vector<128x128xf32>
    %68 = tpu.matmul %65, %67, %cst_31 {dimension_numbers = #tpu.dot_dimension_numbers<[1], [0], [0], [1], [0, 0, 1, 1], [], []>} : vector<128x128xbf16>, vector<128x128xbf16>, vector<128x128xf32> -> vector<128x128xf32>
    %69 = arith.addf %64, %68 : vector<128x128xf32>
    %c127_i32_32 = arith.constant 127 : i32
    %70 = tpu.dynamic_rotate %54 by %c127_i32_32 dim 0 : vector<128x128xf32>, i32 -> vector<128x128xf32>
    %cst_33 = arith.constant 0.000000e+00 : f32
    %71 = vector.shape_cast %26 : vector<128x1xi1> to vector<128x1xi1>
    %72 = vector.broadcast %71 : vector<128x1xi1> to vector<128x128xi1>
    %73 = vector.broadcast %cst_33 : f32 to vector<128x128xf32>
    %74 = arith.select %72, %70, %73 : vector<128x128xi1>, vector<128x128xf32>
    %75 = arith.truncf %74 : vector<128x128xf32> to vector<128x128xbf16>
    %c5 = arith.constant 5 : index
    %c0_34 = arith.constant 0 : index
    %c0_35 = arith.constant 0 : index
    %76 = vector.load %arg4[%c5, %c0_34, %c0_35] : memref<9x128x128xbf16, #tpu.memory_space<vmem>>, vector<1x128x128xbf16>
    %77 = vector.shape_cast %76 : vector<1x128x128xbf16> to vector<128x128xbf16>
    %cst_36 = arith.constant dense<0.000000e+00> : vector<128x128xf32>
    %78 = tpu.matmul %75, %77, %cst_36 {dimension_numbers = #tpu.dot_dimension_numbers<[1], [0], [0], [1], [0, 0, 1, 1], [], []>} : vector<128x128xbf16>, vector<128x128xbf16>, vector<128x128xf32> -> vector<128x128xf32>
    %79 = arith.addf %69, %78 : vector<128x128xf32>
    %80 = vector.extract_strided_slice %5 {offsets = [32, 0], sizes = [128, 128], strides = [1, 1]} : vector<160x128xf32> to vector<128x128xf32>
    %c1_i32_37 = arith.constant 1 : i32
    %81 = tpu.dynamic_rotate %80 by %c1_i32_37 dim 0 : vector<128x128xf32>, i32 -> vector<128x128xf32>
    %cst_38 = arith.constant 0.000000e+00 : f32
    %82 = vector.shape_cast %24 : vector<128x1xi1> to vector<128x1xi1>
    %83 = vector.broadcast %82 : vector<128x1xi1> to vector<128x128xi1>
    %84 = vector.broadcast %cst_38 : f32 to vector<128x128xf32>
    %85 = arith.select %83, %81, %84 : vector<128x128xi1>, vector<128x128xf32>
    %86 = arith.truncf %85 : vector<128x128xf32> to vector<128x128xbf16>
    %c6 = arith.constant 6 : index
    %c0_39 = arith.constant 0 : index
    %c0_40 = arith.constant 0 : index
    %87 = vector.load %arg4[%c6, %c0_39, %c0_40] : memref<9x128x128xbf16, #tpu.memory_space<vmem>>, vector<1x128x128xbf16>
    %88 = vector.shape_cast %87 : vector<1x128x128xbf16> to vector<128x128xbf16>
    %cst_41 = arith.constant dense<0.000000e+00> : vector<128x128xf32>
    %89 = tpu.matmul %86, %88, %cst_41 {dimension_numbers = #tpu.dot_dimension_numbers<[1], [0], [0], [1], [0, 0, 1, 1], [], []>} : vector<128x128xbf16>, vector<128x128xbf16>, vector<128x128xf32> -> vector<128x128xf32>
    %90 = arith.addf %79, %89 : vector<128x128xf32>
    %91 = arith.truncf %80 : vector<128x128xf32> to vector<128x128xbf16>
    %c7 = arith.constant 7 : index
    %c0_42 = arith.constant 0 : index
    %c0_43 = arith.constant 0 : index
    %92 = vector.load %arg4[%c7, %c0_42, %c0_43] : memref<9x128x128xbf16, #tpu.memory_space<vmem>>, vector<1x128x128xbf16>
    %93 = vector.shape_cast %92 : vector<1x128x128xbf16> to vector<128x128xbf16>
    %cst_44 = arith.constant dense<0.000000e+00> : vector<128x128xf32>
    %94 = tpu.matmul %91, %93, %cst_44 {dimension_numbers = #tpu.dot_dimension_numbers<[1], [0], [0], [1], [0, 0, 1, 1], [], []>} : vector<128x128xbf16>, vector<128x128xbf16>, vector<128x128xf32> -> vector<128x128xf32>
    %95 = arith.addf %90, %94 : vector<128x128xf32>
    %c127_i32_45 = arith.constant 127 : i32
    %96 = tpu.dynamic_rotate %80 by %c127_i32_45 dim 0 : vector<128x128xf32>, i32 -> vector<128x128xf32>
    %cst_46 = arith.constant 0.000000e+00 : f32
    %97 = vector.shape_cast %26 : vector<128x1xi1> to vector<128x1xi1>
    %98 = vector.broadcast %97 : vector<128x1xi1> to vector<128x128xi1>
    %99 = vector.broadcast %cst_46 : f32 to vector<128x128xf32>
    %100 = arith.select %98, %96, %99 : vector<128x128xi1>, vector<128x128xf32>
    %101 = arith.truncf %100 : vector<128x128xf32> to vector<128x128xbf16>
    %c8 = arith.constant 8 : index
    %c0_47 = arith.constant 0 : index
    %c0_48 = arith.constant 0 : index
    %102 = vector.load %arg4[%c8, %c0_47, %c0_48] : memref<9x128x128xbf16, #tpu.memory_space<vmem>>, vector<1x128x128xbf16>
    %103 = vector.shape_cast %102 : vector<1x128x128xbf16> to vector<128x128xbf16>
    %cst_49 = arith.constant dense<0.000000e+00> : vector<128x128xf32>
    %104 = tpu.matmul %101, %103, %cst_49 {dimension_numbers = #tpu.dot_dimension_numbers<[1], [0], [0], [1], [0, 0, 1, 1], [], []>} : vector<128x128xbf16>, vector<128x128xbf16>, vector<128x128xf32> -> vector<128x128xf32>
    %105 = arith.addf %95, %104 : vector<128x128xf32>
    %cst_50 = arith.constant 0.000000e+00 : f32
    %106 = vector.broadcast %cst_50 : f32 to vector<128x128xf32>
    %107 = arith.maximumf %105, %106 : vector<128x128xf32>
    %108 = arith.truncf %107 : vector<128x128xf32> to vector<128x128xbf16>
    %c0_51 = arith.constant 0 : index
    %c0_52 = arith.constant 0 : index
    %109 = vector.load %arg5[%c0_51, %c0_52] : memref<128x128xbf16, #tpu.memory_space<vmem>>, vector<128x128xbf16>
    %cst_53 = arith.constant dense<0.000000e+00> : vector<128x128xf32>
    %110 = tpu.matmul %108, %109, %cst_53 {dimension_numbers = #tpu.dot_dimension_numbers<[1], [0], [0], [1], [0, 0, 1, 1], [], []>} : vector<128x128xbf16>, vector<128x128xbf16>, vector<128x128xf32> -> vector<128x128xf32>
    %c0_54 = arith.constant 0 : index
    %c0_55 = arith.constant 0 : index
    %c16 = arith.constant 16 : index
    %c0_56 = arith.constant 0 : index
    %111 = vector.load %arg2[%c0_54, %c0_55, %c16, %c0_56] : memref<1x1x160x128xbf16, #tpu.memory_space<vmem>>, vector<1x1x128x128xbf16>
    %112 = vector.shape_cast %111 : vector<1x1x128x128xbf16> to vector<128x128xbf16>
    %113 = arith.extf %112 : vector<128x128xbf16> to vector<128x128xf32>
    %114 = arith.addf %110, %113 : vector<128x128xf32>
    %cst_57 = arith.constant 0.000000e+00 : f32
    %115 = vector.broadcast %cst_57 : f32 to vector<128x128xf32>
    %116 = arith.maximumf %114, %115 : vector<128x128xf32>
    %c0_58 = arith.constant 0 : index
    %c0_59 = arith.constant 0 : index
    %c0_60 = arith.constant 0 : index
    %117 = vector.load %arg6[%c0_58, %c0_59, %c0_60] : memref<1x128x128xf32, #tpu.memory_space<vmem>>, vector<1x128x128xf32>
    %118 = vector.shape_cast %117 : vector<1x128x128xf32> to vector<128x128xf32>
    %119 = vector.shape_cast %116 : vector<128x128xf32> to vector<1x128x128xf32>
    tpu.vector_store %arg6[%c0_58, %c0_59, %c0_60], %119 {strides = array<i32>} : memref<1x128x128xf32, #tpu.memory_space<vmem>>, vector<1x128x128xf32>,
    return
  }
  func.func @transform_0(%arg0: i32, %arg1: i32) -> (i32, i32, i32, i32) {
    %c0_i32 = arith.constant 0 : i32
    %c0_i32_0 = arith.constant 0 : i32
    %c0_i32_1 = arith.constant 0 : i32
    return %arg0, %arg1, %c0_i32, %c0_i32_0 : i32, i32, i32, i32
  }
  func.func @transform_1(%arg0: i32, %arg1: i32) -> (i32, i32) {
    %c0_i32 = arith.constant 0 : i32
    %c0_i32_0 = arith.constant 0 : i32
    %c0_i32_1 = arith.constant 0 : i32
    return %c0_i32, %c0_i32_0 : i32, i32
  }
  func.func @transform_2(%arg0: i32, %arg1: i32) -> (i32, i32, i32) {
    %c0_i32 = arith.constant 0 : i32
    %c0_i32_0 = arith.constant 0 : i32
    %c0_i32_1 = arith.constant 0 : i32
    %c0_i32_2 = arith.constant 0 : i32
    return %c0_i32, %c0_i32_0, %c0_i32_1 : i32, i32, i32
  }
  func.func @transform_3(%arg0: i32, %arg1: i32) -> (i32, i32) {
    %c0_i32 = arith.constant 0 : i32
    %c0_i32_0 = arith.constant 0 : i32
    %c0_i32_1 = arith.constant 0 : i32
    return %c0_i32, %c0_i32_0 : i32, i32
  }
  func.func @transform_4(%arg0: i32, %arg1: i32) -> (i32, i32, i32) {
    %c0_i32 = arith.constant 0 : i32
    %c0_i32_0 = arith.constant 0 : i32
    return %arg0, %arg1, %c0_i32 : i32, i32, i32
  }
}

</mosaic_0001>

<llo_original>
// kernel: bottleneck_forward.1
$region0: #{bottleneck_forward.1}
  #allocation0 [shape = 'u32[]', space=smem, size = 0x4, offset = 0x4, fixed_abs, tag = 'smem constant byte address 0x4 - core index']
  #allocation1 [shape = 'u32[144,128]{1,0:T(1,128)}', space=vmem, size = 0x12000, scoped, tag = 'internal scratch']
  %s0 = inlined_call_operand.vmem [shape: bf16[2,2,160,128], index: 0, kind: input, shape index: {}]
  %s1 = inlined_call_operand.vmem [shape: bf16[128,128], index: 1, kind: input, shape index: {}]
  %s2 = inlined_call_operand.vmem [shape: bf16[9,128,128], index: 2, kind: input, shape index: {}]
  %s3 = inlined_call_operand.vmem [shape: bf16[128,128], index: 3, kind: input, shape index: {}]
  %s4 = inlined_call_operand.hbm [shape: f32[2,256,128], index: 4, kind: output, shape index: {}]
  %s5 = sld [smem:[#allocation0]]
  $region49: #{bottleneck_forward.1} parent=0
    _
  %s7 = ssub.s32 1, %s5
  %s8 = scalar_select 0, %s7, %s5
  $region1: #{bottleneck_forward.1} parent=0
    #allocation2 [shape = 'u8[131072]{0}', space=vmem, size = 0x20000, scoped, tag = 'output window, operand 0']
    #allocation3 [shape = 's32[2]{0}', space=sflag, size = 0x8, scoped, tag = 'scoped memory for bottleneck_forward.1']
    %9 = vsyncpa [#allocation3], 0
    %s10 = scalar_lea.sflag [#allocation3], 1
    %11 = vsyncpa %s10, 0
    loop: start=0, step=1, limit=6
    $region2: #{bottleneck_forward.1} parent=1 // loop_pre_header
      _
    $region3: #{bottleneck_forward.1} parent=1 // loop_header
      %s13 = sphi 0, %s17
      %p14 = scmp.ge.s32.totalorder %s13, 6
      %s20 = sphi 0, %s32
      %s21 = sphi 0, %s28
      %s22 = sphi 0, %s20
      %s23 = sphi 0, %s21
      %s24 = sphi 0, %s22
      %s25 = sphi 0, %s23
      %s37 = sphi 0, %s39
      %s40 = sphi 0, %s37
      %s41 = sphi 0, %s40
      %s57 = sphi 0, %s41
      %s61 = sphi 0, %s61
      %s63 = sphi 0, %s61
      %s64 = sphi 0, %s63
      %s78 = sphi 0, %s64
      %s82 = sphi 0, %s82
      %s84 = sphi 0, %s82
      %s85 = sphi 0, %s84
      %s99 = sphi 0, %s85
      %s103 = sphi 0, %s103
      %s105 = sphi 0, %s103
      %s106 = sphi 0, %s105
      %s120 = sphi 0, %s106
      %s128 = sphi 0, %s130
      %s131 = sphi 0, %s128
      %s132 = sphi 0, %s131
      %s148 = sphi 0, %s132
    $region4: #{bottleneck_forward.1} parent=1 // loop_header_branch
      %16 = sbr.rel (%p14) target = $region8
    $region5: #{bottleneck_forward.1} parent=1 // loop_body
      %s18 = ssub.s32 %s13, 1
      %s19 = ssub.s32 %s13, 2
      %s26 = sadd.s32 1, %s21
      %p27 = scmp.ge.s32.totalorder %s26, 2
      %s28 = scalar_select %p27, 0, %s26
      %s29 = sadd.s32 1, %s20
      %s30 = scalar_select %p27, %s29, %s20
      %p31 = scmp.ge.s32.totalorder %s30, 2
      %s32 = scalar_select %p31, 0, %s30
      %s33 = ssub.s32 %s20, %s32
      %s34 = ssub.s32 %s21, %s28
      %s35 = sor.u32 %s33, %s34
      %p36 = scmp.eq.s32.totalorder %s35, 0
      %s38 = sadd.s32 %s37, 1
      %s39 = scalar_select %p36, %s37, %s38
      %p42 = pneg %p36
      %p43 = scmp.eq.s32.totalorder %s13, 3
      %p44 = por %p42, %p43
      %p45 = scmp.ne.s32.totalorder %s37, %s40
      %p46 = scmp.eq.s32.totalorder %s13, 0
      %p47 = por %p45, %p46
      %p48 = scmp.ne.s32.totalorder %s37, %s40
      %p49 = scmp.eq.s32.totalorder %s18, 3
      %p50 = por %p48, %p49
      %p51 = scmp.ne.s32.totalorder %s40, %s41
      %p52 = scmp.eq.s32.totalorder %s18, 0
      %p53 = por %p51, %p52
      %p54 = scmp.ne.s32.totalorder %s40, %s41
      %p55 = scmp.eq.s32.totalorder %s19, 3
      %p56 = por %p54, %p55
      %p58 = scmp.ne.s32.totalorder %s41, %s57
      %p59 = scmp.eq.s32.totalorder %s19, 0
      %p60 = por %p58, %p59
      %s62 = sadd.s32 %s61, 1
      %p65 = scmp.eq.s32.totalorder %s13, 3
      %p66 = scmp.ne.s32.totalorder %s61, %s63
      %p67 = scmp.eq.s32.totalorder %s13, 0
      %p68 = por %p66, %p67
      %p69 = scmp.ne.s32.totalorder %s61, %s63
      %p70 = scmp.eq.s32.totalorder %s18, 3
      %p71 = por %p69, %p70
      %p72 = scmp.ne.s32.totalorder %s63, %s64
      %p73 = scmp.eq.s32.totalorder %s18, 0
      %p74 = por %p72, %p73
      %p75 = scmp.ne.s32.totalorder %s63, %s64
      %p76 = scmp.eq.s32.totalorder %s19, 3
      %p77 = por %p75, %p76
      %p79 = scmp.ne.s32.totalorder %s64, %s78
      %p80 = scmp.eq.s32.totalorder %s19, 0
      %p81 = por %p79, %p80
      %s83 = sadd.s32 %s82, 1
      %p86 = scmp.eq.s32.totalorder %s13, 3
      %p87 = scmp.ne.s32.totalorder %s82, %s84
      %p88 = scmp.eq.s32.totalorder %s13, 0
      %p89 = por %p87, %p88
      %p90 = scmp.ne.s32.totalorder %s82, %s84
      %p91 = scmp.eq.s32.totalorder %s18, 3
      %p92 = por %p90, %p91
      %p93 = scmp.ne.s32.totalorder %s84, %s85
      %p94 = scmp.eq.s32.totalorder %s18, 0
      %p95 = por %p93, %p94
      %p96 = scmp.ne.s32.totalorder %s84, %s85
      %p97 = scmp.eq.s32.totalorder %s19, 3
      %p98 = por %p96, %p97
      %p100 = scmp.ne.s32.totalorder %s85, %s99
      %p101 = scmp.eq.s32.totalorder %s19, 0
      %p102 = por %p100, %p101
      %s104 = sadd.s32 %s103, 1
      %p107 = scmp.eq.s32.totalorder %s13, 3
      %p108 = scmp.ne.s32.totalorder %s103, %s105
      %p109 = scmp.eq.s32.totalorder %s13, 0
      %p110 = por %p108, %p109
      %p111 = scmp.ne.s32.totalorder %s103, %s105
      %p112 = scmp.eq.s32.totalorder %s18, 3
      %p113 = por %p111, %p112
      %p114 = scmp.ne.s32.totalorder %s105, %s106
      %p115 = scmp.eq.s32.totalorder %s18, 0
      %p116 = por %p114, %p115
      %p117 = scmp.ne.s32.totalorder %s105, %s106
      %p118 = scmp.eq.s32.totalorder %s19, 3
      %p119 = por %p117, %p118
      %p121 = scmp.ne.s32.totalorder %s106, %s120
      %p122 = scmp.eq.s32.totalorder %s19, 0
      %p123 = por %p121, %p122
      %s124 = ssub.s32 %s20, %s32
      %s125 = ssub.s32 %s21, %s28
      %s126 = sor.u32 %s124, %s125
      %p127 = scmp.eq.s32.totalorder %s126, 0
      %s129 = sadd.s32 %s128, 1
      %s130 = scalar_select %p127, %s128, %s129
      %p133 = pneg %p127
      %p134 = scmp.eq.s32.totalorder %s13, 3
      %p135 = por %p133, %p134
      %p136 = scmp.ne.s32.totalorder %s128, %s131
      %p137 = scmp.eq.s32.totalorder %s13, 0
      %p138 = por %p136, %p137
      %p139 = scmp.ne.s32.totalorder %s128, %s131
      %p140 = scmp.eq.s32.totalorder %s18, 3
      %p141 = por %p139, %p140
      %p142 = scmp.ne.s32.totalorder %s131, %s132
      %p143 = scmp.eq.s32.totalorder %s18, 0
      %p144 = por %p142, %p143
      %p145 = scmp.ne.s32.totalorder %s131, %s132
      %p146 = scmp.eq.s32.totalorder %s19, 3
      %p147 = por %p145, %p146
      %p149 = scmp.ne.s32.totalorder %s132, %s148
      %p150 = scmp.eq.s32.totalorder %s19, 0
      %p151 = por %p149, %p150
      %p152 = scmp.le.s32.totalorder 1, %s13
      %p153 = scmp.lt.s32.totalorder %s13, 5
      %p154 = pnand %p152, %p153
      %p155 = pneg %p154
      // Predicated region
      $region9: #{bottleneck_forward.1} parent=5 // pred_check
        _
      $region10: #{bottleneck_forward.1} parent=5 // pred_check_branch
        %157 = sbr.rel (%p154) target = $region12
      $region11: #{bottleneck_forward.1} parent=5 // pred_region
        %s158 = ssub.s32 %s13, 1
        // Predicated region
        $region13: #{bottleneck_forward.1} parent=11 // pred_check
          %p159 = pneg %p74
        $region14: #{bottleneck_forward.1} parent=11 // pred_check_branch
          %161 = sbr.rel (%p159) target = $region16
        $region15: #{bottleneck_forward.1} parent=11 // pred_region
          _
        $region16: #{bottleneck_forward.1} parent=11 // pred_fallthru
          _
        // Predicated region
        $region17: #{bottleneck_forward.1} parent=11 // pred_check
          %p162 = pneg %p95
        $region18: #{bottleneck_forward.1} parent=11 // pred_check_branch
          %164 = sbr.rel (%p162) target = $region20
        $region19: #{bottleneck_forward.1} parent=11 // pred_region
          _
        $region20: #{bottleneck_forward.1} parent=11 // pred_fallthru
          _
        // Predicated region
        $region21: #{bottleneck_forward.1} parent=11 // pred_check
          %p165 = pneg %p116
        $region22: #{bottleneck_forward.1} parent=11 // pred_check_branch
          %167 = sbr.rel (%p165) target = $region24
        $region23: #{bottleneck_forward.1} parent=11 // pred_region
          _
        $region24: #{bottleneck_forward.1} parent=11 // pred_fallthru
          _
      $region12: #{bottleneck_forward.1} parent=5 // pred_fallthru
        _
      %p168 = scmp.lt.s32.totalorder %s13, 4
      // Predicated region
      $region25: #{bottleneck_forward.1} parent=5 // pred_check
        %p169 = pneg %p168
      $region26: #{bottleneck_forward.1} parent=5 // pred_check_branch
        %171 = sbr.rel (%p169) target = $region28
      $region27: #{bottleneck_forward.1} parent=5 // pred_region
        // Predicated region
        $region29: #{bottleneck_forward.1} parent=27 // pred_check
          %p172 = pneg %p47
        $region30: #{bottleneck_forward.1} parent=27 // pred_check_branch
          %174 = sbr.rel (%p172) target = $region32
        $region31: #{bottleneck_forward.1} parent=27 // pred_region
          %p175 = scmp.lt.s32.totalorder %s20, 1
          %s176 = scalar_select %p175, %s20, 1
          %p177 = scmp.lt.s32.totalorder %s21, 1
          %s178 = scalar_select %p177, %s21, 1
          %s179 = smul.addr %s178, 20
          %s180 = smul.addr %s176, 40
          %s181 = sadd.s32 %s179, %s180
          %s182 = smul.addr %s181, 4
          %s183 = scalar_lea.vmem %s0, %s182
        $region32: #{bottleneck_forward.1} parent=27 // pred_fallthru
          _
      $region28: #{bottleneck_forward.1} parent=5 // pred_fallthru
        _
      %p184 = scmp.le.s32.totalorder 1, %s13
      %p185 = scmp.lt.s32.totalorder %s13, 5
      %p186 = pnand %p184, %p185
      %p187 = pneg %p186
      // Predicated region
      $region33: #{bottleneck_forward.1} parent=5 // pred_check
        _
      $region34: #{bottleneck_forward.1} parent=5 // pred_check_branch
        %189 = sbr.rel (%p186) target = $region36
      $region35: #{bottleneck_forward.1} parent=5 // pred_region
        %s190 = ssub.s32 %s13, 1
        %p191 = scmp.lt.s32.totalorder %s22, 1
        %s192 = scalar_select %p191, %s22, 1
        %p193 = scmp.lt.s32.totalorder %s23, 1
        %s194 = scalar_select %p193, %s23, 1
        %s195 = smul.addr %s194, 20
        %s196 = smul.addr %s192, 40
        %s197 = sadd.s32 %s195, %s196
        %s198 = smul.addr %s197, 4
        %s199 = scalar_lea.vmem %s0, %s198
        %p200 = pneg %p53
        %p201 = pneg %p50
        %p202 = pneg %p74
        %p203 = pneg %p71
        %p204 = pneg %p95
        %p205 = pneg %p92
        %p206 = pneg %p116
        %p207 = pneg %p113
        %p208 = pneg %p144
        %p209 = pneg %p141
        %s210 = sand.u32 %s131, 1
        %s211 = scalar_lea.sflag [#allocation3], %s210
        %s212 = sand.u32 %s131, 1
        %s213 = smul.addr %s212, 128
        %s214 = scalar_lea.vmem [#allocation2], %s213
        %p215 = scmp.lt.s32.totalorder %s22, 1
        %s216 = scalar_select %p215, %s22, 1
        %p217 = scmp.lt.s32.totalorder %s23, 1
        %s218 = scalar_select %p217, %s23, 1
        %s219 = smul.addr %s218, 20
        %s220 = smul.addr %s216, 40
        %s221 = sadd.s32 %s219, %s220
        %s222 = smul.addr %s221, 4
        %s223 = scalar_lea.vmem %s0, %s222
        %s224 = smul.u32 16, %s23
        %v226 = vld [vmem:[%s223] sm:$0xf]
        %v227 = vld [vmem:[%s223 + $0x4] sm:$0xf]
        %v228 = vld [vmem:[%s223 + $0x8] sm:$0xf]
        %v229 = vld [vmem:[%s223 + $0xc] sm:$0xf]
        %v230 = vld [vmem:[%s223 + $0x10] sm:$0xf]
        %v231 = vld [vmem:[%s223 + $0x14] sm:$0xf]
        %v232 = vld [vmem:[%s223 + $0x18] sm:$0xf]
        %v233 = vld [vmem:[%s223 + $0x1c] sm:$0xf]
        %v234 = vld [vmem:[%s223 + $0x20] sm:$0xf]
        %v235 = vld [vmem:[%s223 + $0x24] sm:$0xf]
        %v236 = vld [vmem:[%s223 + $0x28] sm:$0xf]
        %v237 = vld [vmem:[%s223 + $0x2c] sm:$0xf]
        %v238 = vld [vmem:[%s223 + $0x30] sm:$0xf]
        %v239 = vld [vmem:[%s223 + $0x34] sm:$0xf]
        %v240 = vld [vmem:[%s223 + $0x38] sm:$0xf]
        %v241 = vld [vmem:[%s223 + $0x3c] sm:$0xf]
        %v242 = vld [vmem:[%s223 + $0x40] sm:$0xf]
        %v243 = vld [vmem:[%s223 + $0x44] sm:$0xf]
        %v244 = vld [vmem:[%s223 + $0x48] sm:$0xf]
        %v245 = vld [vmem:[%s223 + $0x4c] sm:$0xf]
        %v246 = vld [vmem:[%s1] sm:$0xf]
        %v247 = vld [vmem:[%s1 + $0x4] sm:$0xf]
        %v248 = vld [vmem:[%s1 + $0x8] sm:$0xf]
        %v249 = vld [vmem:[%s1 + $0xc] sm:$0xf]
        %v250 = vld [vmem:[%s1 + $0x10] sm:$0xf]
        %v251 = vld [vmem:[%s1 + $0x14] sm:$0xf]
        %v252 = vld [vmem:[%s1 + $0x18] sm:$0xf]
        %v253 = vld [vmem:[%s1 + $0x1c] sm:$0xf]
        %v254 = vld [vmem:[%s1 + $0x20] sm:$0xf]
        %v255 = vld [vmem:[%s1 + $0x24] sm:$0xf]
        %v256 = vld [vmem:[%s1 + $0x28] sm:$0xf]
        %v257 = vld [vmem:[%s1 + $0x2c] sm:$0xf]
        %v258 = vld [vmem:[%s1 + $0x30] sm:$0xf]
        %v259 = vld [vmem:[%s1 + $0x34] sm:$0xf]
        %v260 = vld [vmem:[%s1 + $0x38] sm:$0xf]
        %v261 = vld [vmem:[%s1 + $0x3c] sm:$0xf]
        %v282 = vunpack.c.l.b16 %v226
        %v283 = vunpack.c.l.b16 %v227
        %v284 = vunpack.c.l.b16 %v228
        %v285 = vunpack.c.l.b16 %v229
        %v286 = vunpack.c.l.b16 %v230
        %v287 = vunpack.c.l.b16 %v231
        %v288 = vunpack.c.l.b16 %v232
        %v289 = vunpack.c.l.b16 %v233
        %v290 = vunpack.c.l.b16 %v234
        %v291 = vunpack.c.l.b16 %v235
        %v292 = vunpack.c.l.b16 %v236
        %v293 = vunpack.c.l.b16 %v237
        %v294 = vunpack.c.l.b16 %v238
        %v295 = vunpack.c.l.b16 %v239
        %v296 = vunpack.c.l.b16 %v240
        %v297 = vunpack.c.l.b16 %v241
        %v298 = vunpack.c.l.b16 %v242
        %v299 = vunpack.c.l.b16 %v243
        %v300 = vunpack.c.l.b16 %v244
        %v301 = vunpack.c.l.b16 %v245
        %v302 = vpack.c.b16 %v283, %v282
        %v303 = vpack.c.b16 %v285, %v284
        %v304 = vpack.c.b16 %v287, %v286
        %v305 = vpack.c.b16 %v289, %v288
        %v306 = vpack.c.b16 %v291, %v290
        %v307 = vpack.c.b16 %v293, %v292
        %v308 = vpack.c.b16 %v295, %v294
        %v309 = vpack.c.b16 %v297, %v296
        %v310 = vpack.c.b16 %v299, %v298
        %v311 = vpack.c.b16 %v301, %v300
        %v338 = vunpack.c.l.b16 %v246
        %v339 = vunpack.c.l.b16 %v247
        %v340 = vunpack.c.l.b16 %v248
        %v341 = vunpack.c.l.b16 %v249
        %v342 = vunpack.c.l.b16 %v250
        %v343 = vunpack.c.l.b16 %v251
        %v344 = vunpack.c.l.b16 %v252
        %v345 = vunpack.c.l.b16 %v253
        %v346 = vunpack.c.l.b16 %v254
        %v347 = vunpack.c.l.b16 %v255
        %v348 = vunpack.c.l.b16 %v256
        %v349 = vunpack.c.l.b16 %v257
        %v350 = vunpack.c.l.b16 %v258
        %v351 = vunpack.c.l.b16 %v259
        %v352 = vunpack.c.l.b16 %v260
        %v353 = vunpack.c.l.b16 %v261
        %v354 = vpack.c.b16 %v339, %v338
        %v355 = vpack.c.b16 %v341, %v340
        %v356 = vpack.c.b16 %v343, %v342
        %v357 = vpack.c.b16 %v345, %v344
        %v358 = vpack.c.b16 %v347, %v346
        %v359 = vpack.c.b16 %v349, %v348
        %v360 = vpack.c.b16 %v351, %v350
        %v361 = vpack.c.b16 %v353, %v352
        %370 = vmatprep.subr.bf16.mxu0 0
        %371 = vmatpush1.bf16.msra.mxu0 %v354
        %372 = vmatprep.subr.bf16.mxu0 0
        %373 = vmatpush1.bf16.msra.mxu0 %v355
        %374 = vmatprep.subr.bf16.mxu0 0
        %375 = vmatpush1.bf16.msra.mxu0 %v356
        %376 = vmatprep.subr.bf16.mxu0 0
        %377 = vmatpush1.bf16.msra.mxu0 %v357
        %378 = vmatprep.subr.bf16.mxu0 0
        %379 = vmatpush1.bf16.msra.mxu0 %v358
        %380 = vmatprep.subr.bf16.mxu0 0
        %381 = vmatpush1.bf16.msra.mxu0 %v359
        %382 = vmatprep.subr.bf16.mxu0 0
        %383 = vmatpush1.bf16.msra.mxu0 %v360
        %384 = vmatprep.subr.bf16.mxu0 0
        %385 = vmatpush1.bf16.msra.mxu0 %v361
        %386 = vmatprep.subr.bf16.mxu0 0
        %387 = vmatpush1.bf16.msra.mxu0 0
        %388 = vmatprep.subr.bf16.mxu0 0
        %389 = vmatpush1.bf16.msra.mxu0 0
        %390 = vmatprep.subr.bf16.mxu0 0
        %391 = vmatpush1.bf16.msra.mxu0 0
        %392 = vmatprep.subr.bf16.mxu0 0
        %393 = vmatpush1.bf16.msra.mxu0 0
        %394 = vmatprep.subr.bf16.mxu0 0
        %395 = vmatpush1.bf16.msra.mxu0 0
        %396 = vmatprep.subr.bf16.mxu0 0
        %397 = vmatpush1.bf16.msra.mxu0 0
        %398 = vmatprep.subr.bf16.mxu0 0
        %399 = vmatpush1.bf16.msra.mxu0 0
        %400 = vmatprep.subr.bf16.mxu0 0
        %401 = vmatpush1.bf16.msra.mxu0 0
        %402 = vmatprep.mubr.bf16.mxu0 0
        %403 = vmatmul.mubr.bf16.gmra.mrb[0].mxu0 %v302
        %v404 = vpop.f32.mrb[0].mxu0
        %v405 = vadd.f32 0.0, %v404
        %v406 = vpop.f32.mrb[0].mxu0
        %v407 = vpop.f32.mrb[0].mxu0
        %v408 = vadd.f32 0.0, %v407
        %v409 = vpop.f32.mrb[0].mxu0
        %410 = vmatprep.mubr.bf16.mxu0 0
        %411 = vmatmul.mubr.bf16.gmra.mrb[0].mxu0 %v303
        %v412 = vpop.f32.mrb[0].mxu0
        %v413 = vadd.f32 0.0, %v412
        %v414 = vpop.f32.mrb[0].mxu0
        %v415 = vpop.f32.mrb[0].mxu0
        %v416 = vadd.f32 0.0, %v415
        %v417 = vpop.f32.mrb[0].mxu0
        %418 = vmatprep.mubr.bf16.mxu0 0
        %419 = vmatmul.mubr.bf16.gmra.mrb[0].mxu0 %v304
        %v420 = vpop.f32.mrb[0].mxu0
        %v421 = vadd.f32 0.0, %v420
        %v422 = vpop.f32.mrb[0].mxu0
        %v423 = vpop.f32.mrb[0].mxu0
        %v424 = vadd.f32 0.0, %v423
        %v425 = vpop.f32.mrb[0].mxu0
        %426 = vmatprep.mubr.bf16.mxu0 0
        %427 = vmatmul.mubr.bf16.gmra.mrb[0].mxu0 %v305
        %v428 = vpop.f32.mrb[0].mxu0
        %v429 = vadd.f32 0.0, %v428
        %v430 = vpop.f32.mrb[0].mxu0
        %v431 = vpop.f32.mrb[0].mxu0
        %v432 = vadd.f32 0.0, %v431
        %v433 = vpop.f32.mrb[0].mxu0
        %434 = vmatprep.mubr.bf16.mxu0 0
        %435 = vmatmul.mubr.bf16.gmra.mrb[0].mxu0 %v306
        %v436 = vpop.f32.mrb[0].mxu0
        %v437 = vadd.f32 0.0, %v436
        %v438 = vpop.f32.mrb[0].mxu0
        %v439 = vpop.f32.mrb[0].mxu0
        %v440 = vadd.f32 0.0, %v439
        %v441 = vpop.f32.mrb[0].mxu0
        %442 = vmatprep.mubr.bf16.mxu0 0
        %443 = vmatmul.mubr.bf16.gmra.mrb[0].mxu0 %v307
        %v444 = vpop.f32.mrb[0].mxu0
        %v445 = vadd.f32 0.0, %v444
        %v446 = vpop.f32.mrb[0].mxu0
        %v447 = vpop.f32.mrb[0].mxu0
        %v448 = vadd.f32 0.0, %v447
        %v449 = vpop.f32.mrb[0].mxu0
        %450 = vmatprep.mubr.bf16.mxu0 0
        %451 = vmatmul.mubr.bf16.gmra.mrb[0].mxu0 %v308
        %v452 = vpop.f32.mrb[0].mxu0
        %v453 = vadd.f32 0.0, %v452
        %v454 = vpop.f32.mrb[0].mxu0
        %v455 = vpop.f32.mrb[0].mxu0
        %v456 = vadd.f32 0.0, %v455
        %v457 = vpop.f32.mrb[0].mxu0
        %458 = vmatprep.mubr.bf16.mxu0 0
        %459 = vmatmul.mubr.bf16.gmra.mrb[0].mxu0 %v309
        %v460 = vpop.f32.mrb[0].mxu0
        %v461 = vadd.f32 0.0, %v460
        %v462 = vpop.f32.mrb[0].mxu0
        %v463 = vpop.f32.mrb[0].mxu0
        %v464 = vadd.f32 0.0, %v463
        %v465 = vpop.f32.mrb[0].mxu0
        %466 = vmatprep.mubr.bf16.mxu0 0
        %467 = vmatmul.mubr.bf16.gmra.mrb[0].mxu0 %v310
        %v468 = vpop.f32.mrb[0].mxu0
        %v469 = vadd.f32 0.0, %v468
        %v470 = vpop.f32.mrb[0].mxu0
        %v471 = vpop.f32.mrb[0].mxu0
        %v472 = vadd.f32 0.0, %v471
        %v473 = vpop.f32.mrb[0].mxu0
        %474 = vmatprep.mubr.bf16.mxu0 0
        %475 = vmatmul.mubr.bf16.gmra.mrb[0].mxu0 %v311
        %v476 = vpop.f32.mrb[0].mxu0
        %v477 = vadd.f32 0.0, %v476
        %v478 = vpop.f32.mrb[0].mxu0
        %v479 = vpop.f32.mrb[0].mxu0
        %v480 = vadd.f32 0.0, %v479
        %v481 = vpop.f32.mrb[0].mxu0
        %482 = vdwg.mxu0
        %v483 = vmax.f32 %v405, 0.0
        %v484 = vmax.f32 %v408, 0.0
        %v485 = vmax.f32 %v413, 0.0
        %v486 = vmax.f32 %v416, 0.0
        %v487 = vmax.f32 %v421, 0.0
        %v488 = vmax.f32 %v424, 0.0
        %v489 = vmax.f32 %v429, 0.0
        %v490 = vmax.f32 %v432, 0.0
        %v491 = vmax.f32 %v437, 0.0
        %v492 = vmax.f32 %v440, 0.0
        %v493 = vmax.f32 %v445, 0.0
        %v494 = vmax.f32 %v448, 0.0
        %v495 = vmax.f32 %v453, 0.0
        %v496 = vmax.f32 %v456, 0.0
        %v497 = vmax.f32 %v461, 0.0
        %v498 = vmax.f32 %v464, 0.0
        %v499 = vmax.f32 %v469, 0.0
        %v500 = vmax.f32 %v472, 0.0
        %v501 = vmax.f32 %v477, 0.0
        %v502 = vmax.f32 %v480, 0.0
        %v503 = vlaneseq
        %v504 = vshrl.u32 %v503, 7
        %v505 = vadd.s32 %v504, 8
        %v506 = vadd.s32 %v504, 16
        %v507 = vadd.s32 %v504, 24
        %v508 = vadd.s32 %v504, 32
        %v509 = vadd.s32 %v504, 40
        %v510 = vadd.s32 %v504, 48
        %v511 = vadd.s32 %v504, 56
        %v512 = vadd.s32 %v504, 64
        %v513 = vadd.s32 %v504, 72
        %v514 = vadd.s32 %v504, 80
        %v515 = vadd.s32 %v504, 88
        %v516 = vadd.s32 %v504, 96
        %v517 = vadd.s32 %v504, 104
        %v518 = vadd.s32 %v504, 112
        %v519 = vadd.s32 %v504, 120
        %vm520 = vcmp.lt.s32.totalorder %v504, 0
        %v521 = vsub.s32 0, %v504
        %v522 = vsel %vm520, %v521, %v504
        %v523 = vshrl.u32 %v522, 4
        %v524 = vand.u32 %v522, 15
        %v525 = vsub.s32 0, %v524
        %v526 = vsel %vm520, %v525, %v524
        %vm527 = vcmp.lt.s32.totalorder %v505, 0
        %v528 = vsub.s32 0, %v505
        %v529 = vsel %vm527, %v528, %v505
        %v530 = vshrl.u32 %v529, 4
        %v531 = vand.u32 %v529, 15
        %v532 = vsub.s32 0, %v531
        %v533 = vsel %vm527, %v532, %v531
        %vm534 = vcmp.lt.s32.totalorder %v506, 0
        %v535 = vsub.s32 0, %v506
        %v536 = vsel %vm534, %v535, %v506
        %v537 = vshrl.u32 %v536, 4
        %v538 = vand.u32 %v536, 15
        %v539 = vsub.s32 0, %v538
        %v540 = vsel %vm534, %v539, %v538
        %vm541 = vcmp.lt.s32.totalorder %v507, 0
        %v542 = vsub.s32 0, %v507
        %v543 = vsel %vm541, %v542, %v507
        %v544 = vshrl.u32 %v543, 4
        %v545 = vand.u32 %v543, 15
        %v546 = vsub.s32 0, %v545
        %v547 = vsel %vm541, %v546, %v545
        %vm548 = vcmp.lt.s32.totalorder %v508, 0
        %v549 = vsub.s32 0, %v508
        %v550 = vsel %vm548, %v549, %v508
        %v551 = vshrl.u32 %v550, 4
        %v552 = vand.u32 %v550, 15
        %v553 = vsub.s32 0, %v552
        %v554 = vsel %vm548, %v553, %v552
        %vm555 = vcmp.lt.s32.totalorder %v509, 0
        %v556 = vsub.s32 0, %v509
        %v557 = vsel %vm555, %v556, %v509
        %v558 = vshrl.u32 %v557, 4
        %v559 = vand.u32 %v557, 15
        %v560 = vsub.s32 0, %v559
        %v561 = vsel %vm555, %v560, %v559
        %vm562 = vcmp.lt.s32.totalorder %v510, 0
        %v563 = vsub.s32 0, %v510
        %v564 = vsel %vm562, %v563, %v510
        %v565 = vshrl.u32 %v564, 4
        %v566 = vand.u32 %v564, 15
        %v567 = vsub.s32 0, %v566
        %v568 = vsel %vm562, %v567, %v566
        %vm569 = vcmp.lt.s32.totalorder %v511, 0
        %v570 = vsub.s32 0, %v511
        %v571 = vsel %vm569, %v570, %v511
        %v572 = vshrl.u32 %v571, 4
        %v573 = vand.u32 %v571, 15
        %v574 = vsub.s32 0, %v573
        %v575 = vsel %vm569, %v574, %v573
        %vm576 = vcmp.lt.s32.totalorder %v512, 0
        %v577 = vsub.s32 0, %v512
        %v578 = vsel %vm576, %v577, %v512
        %v579 = vshrl.u32 %v578, 4
        %v580 = vand.u32 %v578, 15
        %v581 = vsub.s32 0, %v580
        %v582 = vsel %vm576, %v581, %v580
        %vm583 = vcmp.lt.s32.totalorder %v513, 0
        %v584 = vsub.s32 0, %v513
        %v585 = vsel %vm583, %v584, %v513
        %v586 = vshrl.u32 %v585, 4
        %v587 = vand.u32 %v585, 15
        %v588 = vsub.s32 0, %v587
        %v589 = vsel %vm583, %v588, %v587
        %vm590 = vcmp.lt.s32.totalorder %v514, 0
        %v591 = vsub.s32 0, %v514
        %v592 = vsel %vm590, %v591, %v514
        %v593 = vshrl.u32 %v592, 4
        %v594 = vand.u32 %v592, 15
        %v595 = vsub.s32 0, %v594
        %v596 = vsel %vm590, %v595, %v594
        %vm597 = vcmp.lt.s32.totalorder %v515, 0
        %v598 = vsub.s32 0, %v515
        %v599 = vsel %vm597, %v598, %v515
        %v600 = vshrl.u32 %v599, 4
        %v601 = vand.u32 %v599, 15
        %v602 = vsub.s32 0, %v601
        %v603 = vsel %vm597, %v602, %v601
        %vm604 = vcmp.lt.s32.totalorder %v516, 0
        %v605 = vsub.s32 0, %v516
        %v606 = vsel %vm604, %v605, %v516
        %v607 = vshrl.u32 %v606, 4
        %v608 = vand.u32 %v606, 15
        %v609 = vsub.s32 0, %v608
        %v610 = vsel %vm604, %v609, %v608
        %vm611 = vcmp.lt.s32.totalorder %v517, 0
        %v612 = vsub.s32 0, %v517
        %v613 = vsel %vm611, %v612, %v517
        %v614 = vshrl.u32 %v613, 4
        %v615 = vand.u32 %v613, 15
        %v616 = vsub.s32 0, %v615
        %v617 = vsel %vm611, %v616, %v615
        %vm618 = vcmp.lt.s32.totalorder %v518, 0
        %v619 = vsub.s32 0, %v518
        %v620 = vsel %vm618, %v619, %v518
        %v621 = vshrl.u32 %v620, 4
        %v622 = vand.u32 %v620, 15
        %v623 = vsub.s32 0, %v622
        %v624 = vsel %vm618, %v623, %v622
        %vm625 = vcmp.lt.s32.totalorder %v519, 0
        %v626 = vsub.s32 0, %v519
        %v627 = vsel %vm625, %v626, %v519
        %v628 = vshrl.u32 %v627, 4
        %v629 = vand.u32 %v627, 15
        %v630 = vsub.s32 0, %v629
        %v631 = vsel %vm625, %v630, %v629
        %vm632 = vcmp.ne.s32.totalorder %v526, 0
        %vm633 = vcmp.ne.s32.totalorder %v533, 0
        %vm634 = vcmp.ne.s32.totalorder %v540, 0
        %vm635 = vcmp.ne.s32.totalorder %v547, 0
        %vm636 = vcmp.ne.s32.totalorder %v554, 0
        %vm637 = vcmp.ne.s32.totalorder %v561, 0
        %vm638 = vcmp.ne.s32.totalorder %v568, 0
        %vm639 = vcmp.ne.s32.totalorder %v575, 0
        %vm640 = vcmp.ne.s32.totalorder %v582, 0
        %vm641 = vcmp.ne.s32.totalorder %v589, 0
        %vm642 = vcmp.ne.s32.totalorder %v596, 0
        %vm643 = vcmp.ne.s32.totalorder %v603, 0
        %vm644 = vcmp.ne.s32.totalorder %v610, 0
        %vm645 = vcmp.ne.s32.totalorder %v617, 0
        %vm646 = vcmp.ne.s32.totalorder %v624, 0
        %vm647 = vcmp.ne.s32.totalorder %v631, 0
        %vm648 = vcmp.lt.s32.totalorder %v526, 0
        %vm649 = vcmp.lt.s32.totalorder %v533, 0
        %vm650 = vcmp.lt.s32.totalorder %v540, 0
        %vm651 = vcmp.lt.s32.totalorder %v547, 0
        %vm652 = vcmp.lt.s32.totalorder %v554, 0
        %vm653 = vcmp.lt.s32.totalorder %v561, 0
        %vm654 = vcmp.lt.s32.totalorder %v568, 0
        %vm655 = vcmp.lt.s32.totalorder %v575, 0
        %vm656 = vcmp.lt.s32.totalorder %v582, 0
        %vm657 = vcmp.lt.s32.totalorder %v589, 0
        %vm658 = vcmp.lt.s32.totalorder %v596, 0
        %vm659 = vcmp.lt.s32.totalorder %v603, 0
        %vm660 = vcmp.lt.s32.totalorder %v610, 0
        %vm661 = vcmp.lt.s32.totalorder %v617, 0
        %vm662 = vcmp.lt.s32.totalorder %v624, 0
        %vm663 = vcmp.lt.s32.totalorder %v631, 0
        %vm664 = vmand %vm648, %vm632
        %vm665 = vmand %vm649, %vm633
        %vm666 = vmand %vm650, %vm634
        %vm667 = vmand %vm651, %vm635
        %vm668 = vmand %vm652, %vm636
        %vm669 = vmand %vm653, %vm637
        %vm670 = vmand %vm654, %vm638
        %vm671 = vmand %vm655, %vm639
        %vm672 = vmand %vm656, %vm640
        %vm673 = vmand %vm657, %vm641
        %vm674 = vmand %vm658, %vm642
        %vm675 = vmand %vm659, %vm643
        %vm676 = vmand %vm660, %vm644
        %vm677 = vmand %vm661, %vm645
        %vm678 = vmand %vm662, %vm646
        %vm679 = vmand %vm663, %vm647
        %v680 = vadd.s32 %v526, 16
        %v681 = vadd.s32 %v533, 16
        %v682 = vadd.s32 %v540, 16
        %v683 = vadd.s32 %v547, 16
        %v684 = vadd.s32 %v554, 16
        %v685 = vadd.s32 %v561, 16
        %v686 = vadd.s32 %v568, 16
        %v687 = vadd.s32 %v575, 16
        %v688 = vadd.s32 %v582, 16
        %v689 = vadd.s32 %v589, 16
        %v690 = vadd.s32 %v596, 16
        %v691 = vadd.s32 %v603, 16
        %v692 = vadd.s32 %v610, 16
        %v693 = vadd.s32 %v617, 16
        %v694 = vadd.s32 %v624, 16
        %v695 = vadd.s32 %v631, 16
        %v696 = vsel %vm664, %v680, %v526
        %v697 = vsel %vm665, %v681, %v533
        %v698 = vsel %vm666, %v682, %v540
        %v699 = vsel %vm667, %v683, %v547
        %v700 = vsel %vm668, %v684, %v554
        %v701 = vsel %vm669, %v685, %v561
        %v702 = vsel %vm670, %v686, %v568
        %v703 = vsel %vm671, %v687, %v575
        %v704 = vsel %vm672, %v688, %v582
        %v705 = vsel %vm673, %v689, %v589
        %v706 = vsel %vm674, %v690, %v596
        %v707 = vsel %vm675, %v691, %v603
        %v708 = vsel %vm676, %v692, %v610
        %v709 = vsel %vm677, %v693, %v617
        %v710 = vsel %vm678, %v694, %v624
        %v711 = vsel %vm679, %v695, %v631
        %vm712 = vcmp.gt.s32.totalorder %v696, 0
        %vm713 = vcmp.gt.s32.totalorder %v697, 0
        %vm714 = vcmp.gt.s32.totalorder %v698, 0
        %vm715 = vcmp.gt.s32.totalorder %v699, 0
        %vm716 = vcmp.gt.s32.totalorder %v700, 0
        %vm717 = vcmp.gt.s32.totalorder %v701, 0
        %vm718 = vcmp.gt.s32.totalorder %v702, 0
        %vm719 = vcmp.gt.s32.totalorder %v703, 0
        %vm720 = vcmp.gt.s32.totalorder %v704, 0
        %vm721 = vcmp.gt.s32.totalorder %v705, 0
        %vm722 = vcmp.gt.s32.totalorder %v706, 0
        %vm723 = vcmp.gt.s32.totalorder %v707, 0
        %vm724 = vcmp.gt.s32.totalorder %v708, 0
        %vm725 = vcmp.gt.s32.totalorder %v709, 0
        %vm726 = vcmp.gt.s32.totalorder %v710, 0
        %vm727 = vcmp.gt.s32.totalorder %v711, 0
        %vm728 = vcmp.lt.s32.totalorder %v696, 15
        %vm729 = vcmp.lt.s32.totalorder %v697, 15
        %vm730 = vcmp.lt.s32.totalorder %v698, 15
        %vm731 = vcmp.lt.s32.totalorder %v699, 15
        %vm732 = vcmp.lt.s32.totalorder %v700, 15
        %vm733 = vcmp.lt.s32.totalorder %v701, 15
        %vm734 = vcmp.lt.s32.totalorder %v702, 15
        %vm735 = vcmp.lt.s32.totalorder %v703, 15
        %vm736 = vcmp.lt.s32.totalorder %v704, 15
        %vm737 = vcmp.lt.s32.totalorder %v705, 15
        %vm738 = vcmp.lt.s32.totalorder %v706, 15
        %vm739 = vcmp.lt.s32.totalorder %v707, 15
        %vm740 = vcmp.lt.s32.totalorder %v708, 15
        %vm741 = vcmp.lt.s32.totalorder %v709, 15
        %vm742 = vcmp.lt.s32.totalorder %v710, 15
        %vm743 = vcmp.lt.s32.totalorder %v711, 15
        %v744 = vrot.slane %v483, 7
        %v745 = vrot.slane %v484, 7
        %v746 = vrot.slane %v485, 7
        %v747 = vrot.slane %v486, 7
        %v748 = vrot.slane %v487, 7
        %v749 = vrot.slane %v488, 7
        %v750 = vrot.slane %v489, 7
        %v751 = vrot.slane %v490, 7
        %v752 = vrot.slane %v491, 7
        %v753 = vrot.slane %v492, 7
        %v754 = vrot.slane %v493, 7
        %v755 = vrot.slane %v494, 7
        %v756 = vrot.slane %v495, 7
        %v757 = vrot.slane %v496, 7
        %v758 = vrot.slane %v497, 7
        %v759 = vrot.slane %v498, 7
        %vm760 = vcmp.lt.s32.totalorder %v504, 1
        %v761 = vsel %vm760, %v758, %v759
        %v762 = vsel %vm760, %v757, %v758
        %v763 = vsel %vm760, %v756, %v757
        %v764 = vsel %vm760, %v755, %v756
        %v765 = vsel %vm760, %v754, %v755
        %v766 = vsel %vm760, %v753, %v754
        %v767 = vsel %vm760, %v752, %v753
        %v768 = vsel %vm760, %v751, %v752
        %v769 = vsel %vm760, %v750, %v751
        %v770 = vsel %vm760, %v749, %v750
        %v771 = vsel %vm760, %v748, %v749
        %v772 = vsel %vm760, %v747, %v748
        %v773 = vsel %vm760, %v746, %v747
        %v774 = vsel %vm760, %v745, %v746
        %v775 = vsel %vm760, %v744, %v745
        %v776 = vsel %vm760, %v759, %v744
        %v777 = vsel %vm712, 1, 0
        %v778 = vsel %vm713, 1, 0
        %v779 = vsel %vm714, 1, 0
        %v780 = vsel %vm715, 1, 0
        %v781 = vsel %vm716, 1, 0
        %v782 = vsel %vm717, 1, 0
        %v783 = vsel %vm718, 1, 0
        %v784 = vsel %vm719, 1, 0
        %v785 = vsel %vm720, 1, 0
        %v786 = vsel %vm721, 1, 0
        %v787 = vsel %vm722, 1, 0
        %v788 = vsel %vm723, 1, 0
        %v789 = vsel %vm724, 1, 0
        %v790 = vsel %vm725, 1, 0
        %v791 = vsel %vm726, 1, 0
        %v792 = vsel %vm727, 1, 0
        %vm793 = vcmp.eq.s32.totalorder %v777, 1
        %vm794 = vcmp.eq.s32.totalorder %v778, 1
        %vm795 = vcmp.eq.s32.totalorder %v779, 1
        %vm796 = vcmp.eq.s32.totalorder %v780, 1
        %vm797 = vcmp.eq.s32.totalorder %v781, 1
        %vm798 = vcmp.eq.s32.totalorder %v782, 1
        %vm799 = vcmp.eq.s32.totalorder %v783, 1
        %vm800 = vcmp.eq.s32.totalorder %v784, 1
        %vm801 = vcmp.eq.s32.totalorder %v785, 1
        %vm802 = vcmp.eq.s32.totalorder %v786, 1
        %vm803 = vcmp.eq.s32.totalorder %v787, 1
        %vm804 = vcmp.eq.s32.totalorder %v788, 1
        %vm805 = vcmp.eq.s32.totalorder %v789, 1
        %vm806 = vcmp.eq.s32.totalorder %v790, 1
        %vm807 = vcmp.eq.s32.totalorder %v791, 1
        %vm808 = vcmp.eq.s32.totalorder %v792, 1
        %v809 = vsel %vm793, %v776, 0.0
        %v810 = vsel %vm794, %v775, 0.0
        %v811 = vsel %vm795, %v774, 0.0
        %v812 = vsel %vm796, %v773, 0.0
        %v813 = vsel %vm797, %v772, 0.0
        %v814 = vsel %vm798, %v771, 0.0
        %v815 = vsel %vm799, %v770, 0.0
        %v816 = vsel %vm800, %v769, 0.0
        %v817 = vsel %vm801, %v768, 0.0
        %v818 = vsel %vm802, %v767, 0.0
        %v819 = vsel %vm803, %v766, 0.0
        %v820 = vsel %vm804, %v765, 0.0
        %v821 = vsel %vm805, %v764, 0.0
        %v822 = vsel %vm806, %v763, 0.0
        %v823 = vsel %vm807, %v762, 0.0
        %v824 = vsel %vm808, %v761, 0.0
        %v825 = vpack.c.bf16 %v810, %v809
        %v826 = vpack.c.bf16 %v812, %v811
        %v827 = vpack.c.bf16 %v814, %v813
        %v828 = vpack.c.bf16 %v816, %v815
        %v829 = vpack.c.bf16 %v818, %v817
        %v830 = vpack.c.bf16 %v820, %v819
        %v831 = vpack.c.bf16 %v822, %v821
        %v832 = vpack.c.bf16 %v824, %v823
        %v833 = vld [vmem:[%s2] sm:$0xf]
        %v834 = vld [vmem:[%s2 + $0x4] sm:$0xf]
        %v835 = vld [vmem:[%s2 + $0x8] sm:$0xf]
        %v836 = vld [vmem:[%s2 + $0xc] sm:$0xf]
        %v837 = vld [vmem:[%s2 + $0x10] sm:$0xf]
        %v838 = vld [vmem:[%s2 + $0x14] sm:$0xf]
        %v839 = vld [vmem:[%s2 + $0x18] sm:$0xf]
        %v840 = vld [vmem:[%s2 + $0x1c] sm:$0xf]
        %v841 = vld [vmem:[%s2 + $0x20] sm:$0xf]
        %v842 = vld [vmem:[%s2 + $0x24] sm:$0xf]
        %v843 = vld [vmem:[%s2 + $0x28] sm:$0xf]
        %v844 = vld [vmem:[%s2 + $0x2c] sm:$0xf]
        %v845 = vld [vmem:[%s2 + $0x30] sm:$0xf]
        %v846 = vld [vmem:[%s2 + $0x34] sm:$0xf]
        %v847 = vld [vmem:[%s2 + $0x38] sm:$0xf]
        %v848 = vld [vmem:[%s2 + $0x3c] sm:$0xf]
        %v849 = vpack.c.bf16 %v484, %v483
        %v850 = vpack.c.bf16 %v486, %v485
        %v851 = vpack.c.bf16 %v488, %v487
        %v852 = vpack.c.bf16 %v490, %v489
        %v853 = vpack.c.bf16 %v492, %v491
        %v854 = vpack.c.bf16 %v494, %v493
        %v855 = vpack.c.bf16 %v496, %v495
        %v856 = vpack.c.bf16 %v498, %v497
        %s857 = scalar_lea.vmem %s2, 64
        %v858 = vld [vmem:[%s857] sm:$0xf]
        %v859 = vld [vmem:[%s857 + $0x4] sm:$0xf]
        %v860 = vld [vmem:[%s857 + $0x8] sm:$0xf]
        %v861 = vld [vmem:[%s857 + $0xc] sm:$0xf]
        %v862 = vld [vmem:[%s857 + $0x10] sm:$0xf]
        %v863 = vld [vmem:[%s857 + $0x14] sm:$0xf]
        %v864 = vld [vmem:[%s857 + $0x18] sm:$0xf]
        %v865 = vld [vmem:[%s857 + $0x1c] sm:$0xf]
        %v866 = vld [vmem:[%s857 + $0x20] sm:$0xf]
        %v867 = vld [vmem:[%s857 + $0x24] sm:$0xf]
        %v868 = vld [vmem:[%s857 + $0x28] sm:$0xf]
        %v869 = vld [vmem:[%s857 + $0x2c] sm:$0xf]
        %v870 = vld [vmem:[%s857 + $0x30] sm:$0xf]
        %v871 = vld [vmem:[%s857 + $0x34] sm:$0xf]
        %v872 = vld [vmem:[%s857 + $0x38] sm:$0xf]
        %v873 = vld [vmem:[%s857 + $0x3c] sm:$0xf]
        %v890 = vunpack.c.l.b16 %v858
        %v891 = vunpack.c.l.b16 %v859
        %v892 = vunpack.c.l.b16 %v860
        %v893 = vunpack.c.l.b16 %v861
        %v894 = vunpack.c.l.b16 %v862
        %v895 = vunpack.c.l.b16 %v863
        %v896 = vunpack.c.l.b16 %v864
        %v897 = vunpack.c.l.b16 %v865
        %v898 = vunpack.c.l.b16 %v866
        %v899 = vunpack.c.l.b16 %v867
        %v900 = vunpack.c.l.b16 %v868
        %v901 = vunpack.c.l.b16 %v869
        %v902 = vunpack.c.l.b16 %v870
        %v903 = vunpack.c.l.b16 %v871
        %v904 = vunpack.c.l.b16 %v872
        %v905 = vunpack.c.l.b16 %v873
        %v906 = vpack.c.b16 %v891, %v890
        %v907 = vpack.c.b16 %v893, %v892
        %v908 = vpack.c.b16 %v895, %v894
        %v909 = vpack.c.b16 %v897, %v896
        %v910 = vpack.c.b16 %v899, %v898
        %v911 = vpack.c.b16 %v901, %v900
        %v912 = vpack.c.b16 %v903, %v902
        %v913 = vpack.c.b16 %v905, %v904
        %922 = vmatprep.subr.bf16.mxu0 0
        %923 = vmatpush1.bf16.msra.mxu0 %v906
        %924 = vmatprep.subr.bf16.mxu0 0
        %925 = vmatpush1.bf16.msra.mxu0 %v907
        %926 = vmatprep.subr.bf16.mxu0 0
        %927 = vmatpush1.bf16.msra.mxu0 %v908
        %928 = vmatprep.subr.bf16.mxu0 0
        %929 = vmatpush1.bf16.msra.mxu0 %v909
        %930 = vmatprep.subr.bf16.mxu0 0
        %931 = vmatpush1.bf16.msra.mxu0 %v910
        %932 = vmatprep.subr.bf16.mxu0 0
        %933 = vmatpush1.bf16.msra.mxu0 %v911
        %934 = vmatprep.subr.bf16.mxu0 0
        %935 = vmatpush1.bf16.msra.mxu0 %v912
        %936 = vmatprep.subr.bf16.mxu0 0
        %937 = vmatpush1.bf16.msra.mxu0 %v913
        %938 = vmatprep.subr.bf16.mxu0 0
        %939 = vmatpush1.bf16.msra.mxu0 0
        %940 = vmatprep.subr.bf16.mxu0 0
        %941 = vmatpush1.bf16.msra.mxu0 0
        %942 = vmatprep.subr.bf16.mxu0 0
        %943 = vmatpush1.bf16.msra.mxu0 0
        %944 = vmatprep.subr.bf16.mxu0 0
        %945 = vmatpush1.bf16.msra.mxu0 0
        %946 = vmatprep.subr.bf16.mxu0 0
        %947 = vmatpush1.bf16.msra.mxu0 0
        %948 = vmatprep.subr.bf16.mxu0 0
        %949 = vmatpush1.bf16.msra.mxu0 0
        %950 = vmatprep.subr.bf16.mxu0 0
        %951 = vmatpush1.bf16.msra.mxu0 0
        %952 = vmatprep.subr.bf16.mxu0 0
        %953 = vmatpush1.bf16.msra.mxu0 0
        %954 = vmatprep.mubr.bf16.mxu0 0
        %955 = vmatmul.mubr.bf16.gmra.mrb[0].mxu0 %v849
        %v956 = vpop.f32.mrb[0].mxu0
        %v957 = vadd.f32 0.0, %v956
        %v958 = vpop.f32.mrb[0].mxu0
        %v959 = vpop.f32.mrb[0].mxu0
        %v960 = vadd.f32 0.0, %v959
        %v961 = vpop.f32.mrb[0].mxu0
        %962 = vmatprep.mubr.bf16.mxu0 0
        %963 = vmatmul.mubr.bf16.gmra.mrb[0].mxu0 %v850
        %v964 = vpop.f32.mrb[0].mxu0
        %v965 = vadd.f32 0.0, %v964
        %v966 = vpop.f32.mrb[0].mxu0
        %v967 = vpop.f32.mrb[0].mxu0
        %v968 = vadd.f32 0.0, %v967
        %v969 = vpop.f32.mrb[0].mxu0
        %970 = vmatprep.mubr.bf16.mxu0 0
        %971 = vmatmul.mubr.bf16.gmra.mrb[0].mxu0 %v851
        %v972 = vpop.f32.mrb[0].mxu0
        %v973 = vadd.f32 0.0, %v972
        %v974 = vpop.f32.mrb[0].mxu0
        %v975 = vpop.f32.mrb[0].mxu0
        %v976 = vadd.f32 0.0, %v975
        %v977 = vpop.f32.mrb[0].mxu0
        %978 = vmatprep.mubr.bf16.mxu0 0
        %979 = vmatmul.mubr.bf16.gmra.mrb[0].mxu0 %v852
        %v980 = vpop.f32.mrb[0].mxu0
        %v981 = vadd.f32 0.0, %v980
        %v982 = vpop.f32.mrb[0].mxu0
        %v983 = vpop.f32.mrb[0].mxu0
        %v984 = vadd.f32 0.0, %v983
        %v985 = vpop.f32.mrb[0].mxu0
        %986 = vmatprep.mubr.bf16.mxu0 0
        %987 = vmatmul.mubr.bf16.gmra.mrb[0].mxu0 %v853
        %v988 = vpop.f32.mrb[0].mxu0
        %v989 = vadd.f32 0.0, %v988
        %v990 = vpop.f32.mrb[0].mxu0
        %v991 = vpop.f32.mrb[0].mxu0
        %v992 = vadd.f32 0.0, %v991
        %v993 = vpop.f32.mrb[0].mxu0
        %994 = vmatprep.mubr.bf16.mxu0 0
        %995 = vmatmul.mubr.bf16.gmra.mrb[0].mxu0 %v854
        %v996 = vpop.f32.mrb[0].mxu0
        %v997 = vadd.f32 0.0, %v996
        %v998 = vpop.f32.mrb[0].mxu0
        %v999 = vpop.f32.mrb[0].mxu0
        %v1000 = vadd.f32 0.0, %v999
        %v1001 = vpop.f32.mrb[0].mxu0
        %1002 = vmatprep.mubr.bf16.mxu0 0
        %1003 = vmatmul.mubr.bf16.gmra.mrb[0].mxu0 %v855
        %v1004 = vpop.f32.mrb[0].mxu0
        %v1005 = vadd.f32 0.0, %v1004
        %v1006 = vpop.f32.mrb[0].mxu0
        %v1007 = vpop.f32.mrb[0].mxu0
        %v1008 = vadd.f32 0.0, %v1007
        %v1009 = vpop.f32.mrb[0].mxu0
        %1010 = vmatprep.mubr.bf16.mxu0 0
        %1011 = vmatmul.mubr.bf16.gmra.mrb[0].mxu0 %v856
        %v1012 = vpop.f32.mrb[0].mxu0
        %v1013 = vadd.f32 0.0, %v1012
        %v1014 = vpop.f32.mrb[0].mxu0
        %v1015 = vpop.f32.mrb[0].mxu0
        %v1016 = vadd.f32 0.0, %v1015
        %v1017 = vpop.f32.mrb[0].mxu0
        %1018 = vdwg.mxu0
        %v1035 = vunpack.c.l.b16 %v833
        %v1036 = vunpack.c.l.b16 %v834
        %v1037 = vunpack.c.l.b16 %v835
        %v1038 = vunpack.c.l.b16 %v836
        %v1039 = vunpack.c.l.b16 %v837
        %v1040 = vunpack.c.l.b16 %v838
        %v1041 = vunpack.c.l.b16 %v839
        %v1042 = vunpack.c.l.b16 %v840
        %v1043 = vunpack.c.l.b16 %v841
        %v1044 = vunpack.c.l.b16 %v842
        %v1045 = vunpack.c.l.b16 %v843
        %v1046 = vunpack.c.l.b16 %v844
        %v1047 = vunpack.c.l.b16 %v845
        %v1048 = vunpack.c.l.b16 %v846
        %v1049 = vunpack.c.l.b16 %v847
        %v1050 = vunpack.c.l.b16 %v848
        %v1051 = vpack.c.b16 %v1036, %v1035
        %v1052 = vpack.c.b16 %v1038, %v1037
        %v1053 = vpack.c.b16 %v1040, %v1039
        %v1054 = vpack.c.b16 %v1042, %v1041
        %v1055 = vpack.c.b16 %v1044, %v1043
        %v1056 = vpack.c.b16 %v1046, %v1045
        %v1057 = vpack.c.b16 %v1048, %v1047
        %v1058 = vpack.c.b16 %v1050, %v1049
        %1067 = vmatprep.subr.bf16.mxu0 0
        %1068 = vmatpush1.bf16.msra.mxu0 %v1051
        %1069 = vmatprep.subr.bf16.mxu0 0
        %1070 = vmatpush1.bf16.msra.mxu0 %v1052
        %1071 = vmatprep.subr.bf16.mxu0 0
        %1072 = vmatpush1.bf16.msra.mxu0 %v1053
        %1073 = vmatprep.subr.bf16.mxu0 0
        %1074 = vmatpush1.bf16.msra.mxu0 %v1054
        %1075 = vmatprep.subr.bf16.mxu0 0
        %1076 = vmatpush1.bf16.msra.mxu0 %v1055
        %1077 = vmatprep.subr.bf16.mxu0 0
        %1078 = vmatpush1.bf16.msra.mxu0 %v1056
        %1079 = vmatprep.subr.bf16.mxu0 0
        %1080 = vmatpush1.bf16.msra.mxu0 %v1057
        %1081 = vmatprep.subr.bf16.mxu0 0
        %1082 = vmatpush1.bf16.msra.mxu0 %v1058
        %1083 = vmatprep.subr.bf16.mxu0 0
        %1084 = vmatpush1.bf16.msra.mxu0 0
        %1085 = vmatprep.subr.bf16.mxu0 0
        %1086 = vmatpush1.bf16.msra.mxu0 0
        %1087 = vmatprep.subr.bf16.mxu0 0
        %1088 = vmatpush1.bf16.msra.mxu0 0
        %1089 = vmatprep.subr.bf16.mxu0 0
        %1090 = vmatpush1.bf16.msra.mxu0 0
        %1091 = vmatprep.subr.bf16.mxu0 0
        %1092 = vmatpush1.bf16.msra.mxu0 0
        %1093 = vmatprep.subr.bf16.mxu0 0
        %1094 = vmatpush1.bf16.msra.mxu0 0
        %1095 = vmatprep.subr.bf16.mxu0 0
        %1096 = vmatpush1.bf16.msra.mxu0 0
        %1097 = vmatprep.subr.bf16.mxu0 0
        %1098 = vmatpush1.bf16.msra.mxu0 0
        %1099 = vmatprep.mubr.bf16.mxu0 0
        %1100 = vmatmul.mubr.bf16.gmra.mrb[0].mxu0 %v825
        %v1101 = vpop.f32.mrb[0].mxu0
        %v1102 = vadd.f32 %v957, %v1101
        %v1103 = vpop.f32.mrb[0].mxu0
        %v1104 = vpop.f32.mrb[0].mxu0
        %v1105 = vadd.f32 %v960, %v1104
        %v1106 = vpop.f32.mrb[0].mxu0
        %1107 = vmatprep.mubr.bf16.mxu0 0
        %1108 = vmatmul.mubr.bf16.gmra.mrb[0].mxu0 %v826
        %v1109 = vpop.f32.mrb[0].mxu0
        %v1110 = vadd.f32 %v965, %v1109
        %v1111 = vpop.f32.mrb[0].mxu0
        %v1112 = vpop.f32.mrb[0].mxu0
        %v1113 = vadd.f32 %v968, %v1112
        %v1114 = vpop.f32.mrb[0].mxu0
        %1115 = vmatprep.mubr.bf16.mxu0 0
        %1116 = vmatmul.mubr.bf16.gmra.mrb[0].mxu0 %v827
        %v1117 = vpop.f32.mrb[0].mxu0
        %v1118 = vadd.f32 %v973, %v1117
        %v1119 = vpop.f32.mrb[0].mxu0
        %v1120 = vpop.f32.mrb[0].mxu0
        %v1121 = vadd.f32 %v976, %v1120
        %v1122 = vpop.f32.mrb[0].mxu0
        %1123 = vmatprep.mubr.bf16.mxu0 0
        %1124 = vmatmul.mubr.bf16.gmra.mrb[0].mxu0 %v828
        %v1125 = vpop.f32.mrb[0].mxu0
        %v1126 = vadd.f32 %v981, %v1125
        %v1127 = vpop.f32.mrb[0].mxu0
        %v1128 = vpop.f32.mrb[0].mxu0
        %v1129 = vadd.f32 %v984, %v1128
        %v1130 = vpop.f32.mrb[0].mxu0
        %1131 = vmatprep.mubr.bf16.mxu0 0
        %1132 = vmatmul.mubr.bf16.gmra.mrb[0].mxu0 %v829
        %v1133 = vpop.f32.mrb[0].mxu0
        %v1134 = vadd.f32 %v989, %v1133
        %v1135 = vpop.f32.mrb[0].mxu0
        %v1136 = vpop.f32.mrb[0].mxu0
        %v1137 = vadd.f32 %v992, %v1136
        %v1138 = vpop.f32.mrb[0].mxu0
        %1139 = vmatprep.mubr.bf16.mxu0 0
        %1140 = vmatmul.mubr.bf16.gmra.mrb[0].mxu0 %v830
        %v1141 = vpop.f32.mrb[0].mxu0
        %v1142 = vadd.f32 %v997, %v1141
        %v1143 = vpop.f32.mrb[0].mxu0
        %v1144 = vpop.f32.mrb[0].mxu0
        %v1145 = vadd.f32 %v1000, %v1144
        %v1146 = vpop.f32.mrb[0].mxu0
        %1147 = vmatprep.mubr.bf16.mxu0 0
        %1148 = vmatmul.mubr.bf16.gmra.mrb[0].mxu0 %v831
        %v1149 = vpop.f32.mrb[0].mxu0
        %v1150 = vadd.f32 %v1005, %v1149
        %v1151 = vpop.f32.mrb[0].mxu0
        %v1152 = vpop.f32.mrb[0].mxu0
        %v1153 = vadd.f32 %v1008, %v1152
        %v1154 = vpop.f32.mrb[0].mxu0
        %1155 = vmatprep.mubr.bf16.mxu0 0
        %1156 = vmatmul.mubr.bf16.gmra.mrb[0].mxu0 %v832
        %v1157 = vpop.f32.mrb[0].mxu0
        %v1158 = vadd.f32 %v1013, %v1157
        %v1159 = vpop.f32.mrb[0].mxu0
        %v1160 = vpop.f32.mrb[0].mxu0
        %v1161 = vadd.f32 %v1016, %v1160
        %v1162 = vpop.f32.mrb[0].mxu0
        %1163 = vdwg.mxu0
        %v1164 = vrot.slane %v483, 1
        %v1165 = vrot.slane %v484, 1
        %v1166 = vrot.slane %v485, 1
        %v1167 = vrot.slane %v486, 1
        %v1168 = vrot.slane %v487, 1
        %v1169 = vrot.slane %v488, 1
        %v1170 = vrot.slane %v489, 1
        %v1171 = vrot.slane %v490, 1
        %v1172 = vrot.slane %v491, 1
        %v1173 = vrot.slane %v492, 1
        %v1174 = vrot.slane %v493, 1
        %v1175 = vrot.slane %v494, 1
        %v1176 = vrot.slane %v495, 1
        %v1177 = vrot.slane %v496, 1
        %v1178 = vrot.slane %v497, 1
        %v1179 = vrot.slane %v498, 1
        %vm1180 = vcmp.lt.s32.totalorder %v504, 7
        %v1181 = vsel %vm1180, %v1178, %v1179
        %v1182 = vsel %vm1180, %v1177, %v1178
        %v1183 = vsel %vm1180, %v1176, %v1177
        %v1184 = vsel %vm1180, %v1175, %v1176
        %v1185 = vsel %vm1180, %v1174, %v1175
        %v1186 = vsel %vm1180, %v1173, %v1174
        %v1187 = vsel %vm1180, %v1172, %v1173
        %v1188 = vsel %vm1180, %v1171, %v1172
        %v1189 = vsel %vm1180, %v1170, %v1171
        %v1190 = vsel %vm1180, %v1169, %v1170
        %v1191 = vsel %vm1180, %v1168, %v1169
        %v1192 = vsel %vm1180, %v1167, %v1168
        %v1193 = vsel %vm1180, %v1166, %v1167
        %v1194 = vsel %vm1180, %v1165, %v1166
        %v1195 = vsel %vm1180, %v1164, %v1165
        %v1196 = vsel %vm1180, %v1179, %v1164
        %v1197 = vsel %vm728, 1, 0
        %v1198 = vsel %vm729, 1, 0
        %v1199 = vsel %vm730, 1, 0
        %v1200 = vsel %vm731, 1, 0
        %v1201 = vsel %vm732, 1, 0
        %v1202 = vsel %vm733, 1, 0
        %v1203 = vsel %vm734, 1, 0
        %v1204 = vsel %vm735, 1, 0
        %v1205 = vsel %vm736, 1, 0
        %v1206 = vsel %vm737, 1, 0
        %v1207 = vsel %vm738, 1, 0
        %v1208 = vsel %vm739, 1, 0
        %v1209 = vsel %vm740, 1, 0
        %v1210 = vsel %vm741, 1, 0
        %v1211 = vsel %vm742, 1, 0
        %v1212 = vsel %vm743, 1, 0
        %vm1213 = vcmp.eq.s32.totalorder %v1197, 1
        %vm1214 = vcmp.eq.s32.totalorder %v1198, 1
        %vm1215 = vcmp.eq.s32.totalorder %v1199, 1
        %vm1216 = vcmp.eq.s32.totalorder %v1200, 1
        %vm1217 = vcmp.eq.s32.totalorder %v1201, 1
        %vm1218 = vcmp.eq.s32.totalorder %v1202, 1
        %vm1219 = vcmp.eq.s32.totalorder %v1203, 1
        %vm1220 = vcmp.eq.s32.totalorder %v1204, 1
        %vm1221 = vcmp.eq.s32.totalorder %v1205, 1
        %vm1222 = vcmp.eq.s32.totalorder %v1206, 1
        %vm1223 = vcmp.eq.s32.totalorder %v1207, 1
        %vm1224 = vcmp.eq.s32.totalorder %v1208, 1
        %vm1225 = vcmp.eq.s32.totalorder %v1209, 1
        %vm1226 = vcmp.eq.s32.totalorder %v1210, 1
        %vm1227 = vcmp.eq.s32.totalorder %v1211, 1
        %vm1228 = vcmp.eq.s32.totalorder %v1212, 1
        %v1229 = vsel %vm1213, %v1195, 0.0
        %v1230 = vsel %vm1214, %v1194, 0.0
        %v1231 = vsel %vm1215, %v1193, 0.0
        %v1232 = vsel %vm1216, %v1192, 0.0
        %v1233 = vsel %vm1217, %v1191, 0.0
        %v1234 = vsel %vm1218, %v1190, 0.0
        %v1235 = vsel %vm1219, %v1189, 0.0
        %v1236 = vsel %vm1220, %v1188, 0.0
        %v1237 = vsel %vm1221, %v1187, 0.0
        %v1238 = vsel %vm1222, %v1186, 0.0
        %v1239 = vsel %vm1223, %v1185, 0.0
        %v1240 = vsel %vm1224, %v1184, 0.0
        %v1241 = vsel %vm1225, %v1183, 0.0
        %v1242 = vsel %vm1226, %v1182, 0.0
        %v1243 = vsel %vm1227, %v1181, 0.0
        %v1244 = vsel %vm1228, %v1196, 0.0
        %v1245 = vpack.c.bf16 %v1230, %v1229
        %v1246 = vpack.c.bf16 %v1232, %v1231
        %v1247 = vpack.c.bf16 %v1234, %v1233
        %v1248 = vpack.c.bf16 %v1236, %v1235
        %v1249 = vpack.c.bf16 %v1238, %v1237
        %v1250 = vpack.c.bf16 %v1240, %v1239
        %v1251 = vpack.c.bf16 %v1242, %v1241
        %v1252 = vpack.c.bf16 %v1244, %v1243
        %s1253 = scalar_lea.vmem %s2, 128
        %v1254 = vld [vmem:[%s1253] sm:$0xf]
        %v1255 = vld [vmem:[%s1253 + $0x4] sm:$0xf]
        %v1256 = vld [vmem:[%s1253 + $0x8] sm:$0xf]
        %v1257 = vld [vmem:[%s1253 + $0xc] sm:$0xf]
        %v1258 = vld [vmem:[%s1253 + $0x10] sm:$0xf]
        %v1259 = vld [vmem:[%s1253 + $0x14] sm:$0xf]
        %v1260 = vld [vmem:[%s1253 + $0x18] sm:$0xf]
        %v1261 = vld [vmem:[%s1253 + $0x1c] sm:$0xf]
        %v1262 = vld [vmem:[%s1253 + $0x20] sm:$0xf]
        %v1263 = vld [vmem:[%s1253 + $0x24] sm:$0xf]
        %v1264 = vld [vmem:[%s1253 + $0x28] sm:$0xf]
        %v1265 = vld [vmem:[%s1253 + $0x2c] sm:$0xf]
        %v1266 = vld [vmem:[%s1253 + $0x30] sm:$0xf]
        %v1267 = vld [vmem:[%s1253 + $0x34] sm:$0xf]
        %v1268 = vld [vmem:[%s1253 + $0x38] sm:$0xf]
        %v1269 = vld [vmem:[%s1253 + $0x3c] sm:$0xf]
        %v1286 = vunpack.c.l.b16 %v1254
        %v1287 = vunpack.c.l.b16 %v1255
        %v1288 = vunpack.c.l.b16 %v1256
        %v1289 = vunpack.c.l.b16 %v1257
        %v1290 = vunpack.c.l.b16 %v1258
        %v1291 = vunpack.c.l.b16 %v1259
        %v1292 = vunpack.c.l.b16 %v1260
        %v1293 = vunpack.c.l.b16 %v1261
        %v1294 = vunpack.c.l.b16 %v1262
        %v1295 = vunpack.c.l.b16 %v1263
        %v1296 = vunpack.c.l.b16 %v1264
        %v1297 = vunpack.c.l.b16 %v1265
        %v1298 = vunpack.c.l.b16 %v1266
        %v1299 = vunpack.c.l.b16 %v1267
        %v1300 = vunpack.c.l.b16 %v1268
        %v1301 = vunpack.c.l.b16 %v1269
        %v1302 = vpack.c.b16 %v1287, %v1286
        %v1303 = vpack.c.b16 %v1289, %v1288
        %v1304 = vpack.c.b16 %v1291, %v1290
        %v1305 = vpack.c.b16 %v1293, %v1292
        %v1306 = vpack.c.b16 %v1295, %v1294
        %v1307 = vpack.c.b16 %v1297, %v1296
        %v1308 = vpack.c.b16 %v1299, %v1298
        %v1309 = vpack.c.b16 %v1301, %v1300
        %1318 = vmatprep.subr.bf16.mxu0 0
        %1319 = vmatpush1.bf16.msra.mxu0 %v1302
        %1320 = vmatprep.subr.bf16.mxu0 0
        %1321 = vmatpush1.bf16.msra.mxu0 %v1303
        %1322 = vmatprep.subr.bf16.mxu0 0
        %1323 = vmatpush1.bf16.msra.mxu0 %v1304
        %1324 = vmatprep.subr.bf16.mxu0 0
        %1325 = vmatpush1.bf16.msra.mxu0 %v1305
        %1326 = vmatprep.subr.bf16.mxu0 0
        %1327 = vmatpush1.bf16.msra.mxu0 %v1306
        %1328 = vmatprep.subr.bf16.mxu0 0
        %1329 = vmatpush1.bf16.msra.mxu0 %v1307
        %1330 = vmatprep.subr.bf16.mxu0 0
        %1331 = vmatpush1.bf16.msra.mxu0 %v1308
        %1332 = vmatprep.subr.bf16.mxu0 0
        %1333 = vmatpush1.bf16.msra.mxu0 %v1309
        %1334 = vmatprep.subr.bf16.mxu0 0
        %1335 = vmatpush1.bf16.msra.mxu0 0
        %1336 = vmatprep.subr.bf16.mxu0 0
        %1337 = vmatpush1.bf16.msra.mxu0 0
        %1338 = vmatprep.subr.bf16.mxu0 0
        %1339 = vmatpush1.bf16.msra.mxu0 0
        %1340 = vmatprep.subr.bf16.mxu0 0
        %1341 = vmatpush1.bf16.msra.mxu0 0
        %1342 = vmatprep.subr.bf16.mxu0 0
        %1343 = vmatpush1.bf16.msra.mxu0 0
        %1344 = vmatprep.subr.bf16.mxu0 0
        %1345 = vmatpush1.bf16.msra.mxu0 0
        %1346 = vmatprep.subr.bf16.mxu0 0
        %1347 = vmatpush1.bf16.msra.mxu0 0
        %1348 = vmatprep.subr.bf16.mxu0 0
        %1349 = vmatpush1.bf16.msra.mxu0 0
        %1350 = vmatprep.mubr.bf16.mxu0 0
        %1351 = vmatmul.mubr.bf16.gmra.mrb[0].mxu0 %v1245
        %v1352 = vpop.f32.mrb[0].mxu0
        %v1353 = vadd.f32 0.0, %v1352
        %v1354 = vpop.f32.mrb[0].mxu0
        %v1355 = vpop.f32.mrb[0].mxu0
        %v1356 = vadd.f32 0.0, %v1355
        %v1357 = vpop.f32.mrb[0].mxu0
        %1358 = vmatprep.mubr.bf16.mxu0 0
        %1359 = vmatmul.mubr.bf16.gmra.mrb[0].mxu0 %v1246
        %v1360 = vpop.f32.mrb[0].mxu0
        %v1361 = vadd.f32 0.0, %v1360
        %v1362 = vpop.f32.mrb[0].mxu0
        %v1363 = vpop.f32.mrb[0].mxu0
        %v1364 = vadd.f32 0.0, %v1363
        %v1365 = vpop.f32.mrb[0].mxu0
        %1366 = vmatprep.mubr.bf16.mxu0 0
        %1367 = vmatmul.mubr.bf16.gmra.mrb[0].mxu0 %v1247
        %v1368 = vpop.f32.mrb[0].mxu0
        %v1369 = vadd.f32 0.0, %v1368
        %v1370 = vpop.f32.mrb[0].mxu0
        %v1371 = vpop.f32.mrb[0].mxu0
        %v1372 = vadd.f32 0.0, %v1371
        %v1373 = vpop.f32.mrb[0].mxu0
        %1374 = vmatprep.mubr.bf16.mxu0 0
        %1375 = vmatmul.mubr.bf16.gmra.mrb[0].mxu0 %v1248
        %v1376 = vpop.f32.mrb[0].mxu0
        %v1377 = vadd.f32 0.0, %v1376
        %v1378 = vpop.f32.mrb[0].mxu0
        %v1379 = vpop.f32.mrb[0].mxu0
        %v1380 = vadd.f32 0.0, %v1379
        %v1381 = vpop.f32.mrb[0].mxu0
        %1382 = vmatprep.mubr.bf16.mxu0 0
        %1383 = vmatmul.mubr.bf16.gmra.mrb[0].mxu0 %v1249
        %v1384 = vpop.f32.mrb[0].mxu0
        %v1385 = vadd.f32 0.0, %v1384
        %v1386 = vpop.f32.mrb[0].mxu0
        %v1387 = vpop.f32.mrb[0].mxu0
        %v1388 = vadd.f32 0.0, %v1387
        %v1389 = vpop.f32.mrb[0].mxu0
        %1390 = vmatprep.mubr.bf16.mxu0 0
        %1391 = vmatmul.mubr.bf16.gmra.mrb[0].mxu0 %v1250
        %v1392 = vpop.f32.mrb[0].mxu0
        %v1393 = vadd.f32 0.0, %v1392
        %v1394 = vpop.f32.mrb[0].mxu0
        %v1395 = vpop.f32.mrb[0].mxu0
        %v1396 = vadd.f32 0.0, %v1395
        %v1397 = vpop.f32.mrb[0].mxu0
        %1398 = vmatprep.mubr.bf16.mxu0 0
        %1399 = vmatmul.mubr.bf16.gmra.mrb[0].mxu0 %v1251
        %v1400 = vpop.f32.mrb[0].mxu0
        %v1401 = vadd.f32 0.0, %v1400
        %v1402 = vpop.f32.mrb[0].mxu0
        %v1403 = vpop.f32.mrb[0].mxu0
        %v1404 = vadd.f32 0.0, %v1403
        %v1405 = vpop.f32.mrb[0].mxu0
        %1406 = vmatprep.mubr.bf16.mxu0 0
        %1407 = vmatmul.mubr.bf16.gmra.mrb[0].mxu0 %v1252
        %v1408 = vpop.f32.mrb[0].mxu0
        %v1409 = vadd.f32 0.0, %v1408
        %v1410 = vpop.f32.mrb[0].mxu0
        %v1411 = vpop.f32.mrb[0].mxu0
        %v1412 = vadd.f32 0.0, %v1411
        %v1413 = vpop.f32.mrb[0].mxu0
        %1414 = vdwg.mxu0
        %v1415 = vadd.f32 %v1102, %v1353
        %v1416 = vadd.f32 %v1105, %v1356
        %v1417 = vadd.f32 %v1110, %v1361
        %v1418 = vadd.f32 %v1113, %v1364
        %v1419 = vadd.f32 %v1118, %v1369
        %v1420 = vadd.f32 %v1121, %v1372
        %v1421 = vadd.f32 %v1126, %v1377
        %v1422 = vadd.f32 %v1129, %v1380
        %v1423 = vadd.f32 %v1134, %v1385
        %v1424 = vadd.f32 %v1137, %v1388
        %v1425 = vadd.f32 %v1142, %v1393
        %v1426 = vadd.f32 %v1145, %v1396
        %v1427 = vadd.f32 %v1150, %v1401
        %v1428 = vadd.f32 %v1153, %v1404
        %v1429 = vadd.f32 %v1158, %v1409
        %v1430 = vadd.f32 %v1161, %v1412
        %v1431 = vrot.slane %v499, 7
        %v1432 = vrot.slane %v500, 7
        %v1433 = vsel %vm760, %v1431, %v1432
        %v1434 = vsel %vm760, %v759, %v1431
        %v1435 = vsel %vm760, %v1432, %v746
        %v1436 = vsel %vm793, %v1435, 0.0
        %v1437 = vsel %vm794, %v773, 0.0
        %v1438 = vsel %vm795, %v772, 0.0
        %v1439 = vsel %vm796, %v771, 0.0
        %v1440 = vsel %vm797, %v770, 0.0
        %v1441 = vsel %vm798, %v769, 0.0
        %v1442 = vsel %vm799, %v768, 0.0
        %v1443 = vsel %vm800, %v767, 0.0
        %v1444 = vsel %vm801, %v766, 0.0
        %v1445 = vsel %vm802, %v765, 0.0
        %v1446 = vsel %vm803, %v764, 0.0
        %v1447 = vsel %vm804, %v763, 0.0
        %v1448 = vsel %vm805, %v762, 0.0
        %v1449 = vsel %vm806, %v761, 0.0
        %v1450 = vsel %vm807, %v1434, 0.0
        %v1451 = vsel %vm808, %v1433, 0.0
        %v1452 = vpack.c.bf16 %v1437, %v1436
        %v1453 = vpack.c.bf16 %v1439, %v1438
        %v1454 = vpack.c.bf16 %v1441, %v1440
        %v1455 = vpack.c.bf16 %v1443, %v1442
        %v1456 = vpack.c.bf16 %v1445, %v1444
        %v1457 = vpack.c.bf16 %v1447, %v1446
        %v1458 = vpack.c.bf16 %v1449, %v1448
        %v1459 = vpack.c.bf16 %v1451, %v1450
        %s1460 = scalar_lea.vmem %s2, 192
        %v1461 = vld [vmem:[%s1460] sm:$0xf]
        %v1462 = vld [vmem:[%s1460 + $0x4] sm:$0xf]
        %v1463 = vld [vmem:[%s1460 + $0x8] sm:$0xf]
        %v1464 = vld [vmem:[%s1460 + $0xc] sm:$0xf]
        %v1465 = vld [vmem:[%s1460 + $0x10] sm:$0xf]
        %v1466 = vld [vmem:[%s1460 + $0x14] sm:$0xf]
        %v1467 = vld [vmem:[%s1460 + $0x18] sm:$0xf]
        %v1468 = vld [vmem:[%s1460 + $0x1c] sm:$0xf]
        %v1469 = vld [vmem:[%s1460 + $0x20] sm:$0xf]
        %v1470 = vld [vmem:[%s1460 + $0x24] sm:$0xf]
        %v1471 = vld [vmem:[%s1460 + $0x28] sm:$0xf]
        %v1472 = vld [vmem:[%s1460 + $0x2c] sm:$0xf]
        %v1473 = vld [vmem:[%s1460 + $0x30] sm:$0xf]
        %v1474 = vld [vmem:[%s1460 + $0x34] sm:$0xf]
        %v1475 = vld [vmem:[%s1460 + $0x38] sm:$0xf]
        %v1476 = vld [vmem:[%s1460 + $0x3c] sm:$0xf]
        %v1493 = vunpack.c.l.b16 %v1461
        %v1494 = vunpack.c.l.b16 %v1462
        %v1495 = vunpack.c.l.b16 %v1463
        %v1496 = vunpack.c.l.b16 %v1464
        %v1497 = vunpack.c.l.b16 %v1465
        %v1498 = vunpack.c.l.b16 %v1466
        %v1499 = vunpack.c.l.b16 %v1467
        %v1500 = vunpack.c.l.b16 %v1468
        %v1501 = vunpack.c.l.b16 %v1469
        %v1502 = vunpack.c.l.b16 %v1470
        %v1503 = vunpack.c.l.b16 %v1471
        %v1504 = vunpack.c.l.b16 %v1472
        %v1505 = vunpack.c.l.b16 %v1473
        %v1506 = vunpack.c.l.b16 %v1474
        %v1507 = vunpack.c.l.b16 %v1475
        %v1508 = vunpack.c.l.b16 %v1476
        %v1509 = vpack.c.b16 %v1494, %v1493
        %v1510 = vpack.c.b16 %v1496, %v1495
        %v1511 = vpack.c.b16 %v1498, %v1497
        %v1512 = vpack.c.b16 %v1500, %v1499
        %v1513 = vpack.c.b16 %v1502, %v1501
        %v1514 = vpack.c.b16 %v1504, %v1503
        %v1515 = vpack.c.b16 %v1506, %v1505
        %v1516 = vpack.c.b16 %v1508, %v1507
        %1525 = vmatprep.subr.bf16.mxu0 0
        %1526 = vmatpush1.bf16.msra.mxu0 %v1509
        %1527 = vmatprep.subr.bf16.mxu0 0
        %1528 = vmatpush1.bf16.msra.mxu0 %v1510
        %1529 = vmatprep.subr.bf16.mxu0 0
        %1530 = vmatpush1.bf16.msra.mxu0 %v1511
        %1531 = vmatprep.subr.bf16.mxu0 0
        %1532 = vmatpush1.bf16.msra.mxu0 %v1512
        %1533 = vmatprep.subr.bf16.mxu0 0
        %1534 = vmatpush1.bf16.msra.mxu0 %v1513
        %1535 = vmatprep.subr.bf16.mxu0 0
        %1536 = vmatpush1.bf16.msra.mxu0 %v1514
        %1537 = vmatprep.subr.bf16.mxu0 0
        %1538 = vmatpush1.bf16.msra.mxu0 %v1515
        %1539 = vmatprep.subr.bf16.mxu0 0
        %1540 = vmatpush1.bf16.msra.mxu0 %v1516
        %1541 = vmatprep.subr.bf16.mxu0 0
        %1542 = vmatpush1.bf16.msra.mxu0 0
        %1543 = vmatprep.subr.bf16.mxu0 0
        %1544 = vmatpush1.bf16.msra.mxu0 0
        %1545 = vmatprep.subr.bf16.mxu0 0
        %1546 = vmatpush1.bf16.msra.mxu0 0
        %1547 = vmatprep.subr.bf16.mxu0 0
        %1548 = vmatpush1.bf16.msra.mxu0 0
        %1549 = vmatprep.subr.bf16.mxu0 0
        %1550 = vmatpush1.bf16.msra.mxu0 0
        %1551 = vmatprep.subr.bf16.mxu0 0
        %1552 = vmatpush1.bf16.msra.mxu0 0
        %1553 = vmatprep.subr.bf16.mxu0 0
        %1554 = vmatpush1.bf16.msra.mxu0 0
        %1555 = vmatprep.subr.bf16.mxu0 0
        %1556 = vmatpush1.bf16.msra.mxu0 0
        %1557 = vmatprep.mubr.bf16.mxu0 0
        %1558 = vmatmul.mubr.bf16.gmra.mrb[0].mxu0 %v1452
        %v1559 = vpop.f32.mrb[0].mxu0
        %v1560 = vadd.f32 0.0, %v1559
        %v1561 = vpop.f32.mrb[0].mxu0
        %v1562 = vpop.f32.mrb[0].mxu0
        %v1563 = vadd.f32 0.0, %v1562
        %v1564 = vpop.f32.mrb[0].mxu0
        %1565 = vmatprep.mubr.bf16.mxu0 0
        %1566 = vmatmul.mubr.bf16.gmra.mrb[0].mxu0 %v1453
        %v1567 = vpop.f32.mrb[0].mxu0
        %v1568 = vadd.f32 0.0, %v1567
        %v1569 = vpop.f32.mrb[0].mxu0
        %v1570 = vpop.f32.mrb[0].mxu0
        %v1571 = vadd.f32 0.0, %v1570
        %v1572 = vpop.f32.mrb[0].mxu0
        %1573 = vmatprep.mubr.bf16.mxu0 0
        %1574 = vmatmul.mubr.bf16.gmra.mrb[0].mxu0 %v1454
        %v1575 = vpop.f32.mrb[0].mxu0
        %v1576 = vadd.f32 0.0, %v1575
        %v1577 = vpop.f32.mrb[0].mxu0
        %v1578 = vpop.f32.mrb[0].mxu0
        %v1579 = vadd.f32 0.0, %v1578
        %v1580 = vpop.f32.mrb[0].mxu0
        %1581 = vmatprep.mubr.bf16.mxu0 0
        %1582 = vmatmul.mubr.bf16.gmra.mrb[0].mxu0 %v1455
        %v1583 = vpop.f32.mrb[0].mxu0
        %v1584 = vadd.f32 0.0, %v1583
        %v1585 = vpop.f32.mrb[0].mxu0
        %v1586 = vpop.f32.mrb[0].mxu0
        %v1587 = vadd.f32 0.0, %v1586
        %v1588 = vpop.f32.mrb[0].mxu0
        %1589 = vmatprep.mubr.bf16.mxu0 0
        %1590 = vmatmul.mubr.bf16.gmra.mrb[0].mxu0 %v1456
        %v1591 = vpop.f32.mrb[0].mxu0
        %v1592 = vadd.f32 0.0, %v1591
        %v1593 = vpop.f32.mrb[0].mxu0
        %v1594 = vpop.f32.mrb[0].mxu0
        %v1595 = vadd.f32 0.0, %v1594
        %v1596 = vpop.f32.mrb[0].mxu0
        %1597 = vmatprep.mubr.bf16.mxu0 0
        %1598 = vmatmul.mubr.bf16.gmra.mrb[0].mxu0 %v1457
        %v1599 = vpop.f32.mrb[0].mxu0
        %v1600 = vadd.f32 0.0, %v1599
        %v1601 = vpop.f32.mrb[0].mxu0
        %v1602 = vpop.f32.mrb[0].mxu0
        %v1603 = vadd.f32 0.0, %v1602
        %v1604 = vpop.f32.mrb[0].mxu0
        %1605 = vmatprep.mubr.bf16.mxu0 0
        %1606 = vmatmul.mubr.bf16.gmra.mrb[0].mxu0 %v1458
        %v1607 = vpop.f32.mrb[0].mxu0
        %v1608 = vadd.f32 0.0, %v1607
        %v1609 = vpop.f32.mrb[0].mxu0
        %v1610 = vpop.f32.mrb[0].mxu0
        %v1611 = vadd.f32 0.0, %v1610
        %v1612 = vpop.f32.mrb[0].mxu0
        %1613 = vmatprep.mubr.bf16.mxu0 0
        %1614 = vmatmul.mubr.bf16.gmra.mrb[0].mxu0 %v1459
        %v1615 = vpop.f32.mrb[0].mxu0
        %v1616 = vadd.f32 0.0, %v1615
        %v1617 = vpop.f32.mrb[0].mxu0
        %v1618 = vpop.f32.mrb[0].mxu0
        %v1619 = vadd.f32 0.0, %v1618
        %v1620 = vpop.f32.mrb[0].mxu0
        %1621 = vdwg.mxu0
        %v1622 = vadd.f32 %v1415, %v1560
        %v1623 = vadd.f32 %v1416, %v1563
        %v1624 = vadd.f32 %v1417, %v1568
        %v1625 = vadd.f32 %v1418, %v1571
        %v1626 = vadd.f32 %v1419, %v1576
        %v1627 = vadd.f32 %v1420, %v1579
        %v1628 = vadd.f32 %v1421, %v1584
        %v1629 = vadd.f32 %v1422, %v1587
        %v1630 = vadd.f32 %v1423, %v1592
        %v1631 = vadd.f32 %v1424, %v1595
        %v1632 = vadd.f32 %v1425, %v1600
        %v1633 = vadd.f32 %v1426, %v1603
        %v1634 = vadd.f32 %v1427, %v1608
        %v1635 = vadd.f32 %v1428, %v1611
        %v1636 = vadd.f32 %v1429, %v1616
        %v1637 = vadd.f32 %v1430, %v1619
        %v1638 = vpack.c.bf16 %v500, %v499
        %s1639 = scalar_lea.vmem %s2, 256
        %v1640 = vld [vmem:[%s1639] sm:$0xf]
        %v1641 = vld [vmem:[%s1639 + $0x4] sm:$0xf]
        %v1642 = vld [vmem:[%s1639 + $0x8] sm:$0xf]
        %v1643 = vld [vmem:[%s1639 + $0xc] sm:$0xf]
        %v1644 = vld [vmem:[%s1639 + $0x10] sm:$0xf]
        %v1645 = vld [vmem:[%s1639 + $0x14] sm:$0xf]
        %v1646 = vld [vmem:[%s1639 + $0x18] sm:$0xf]
        %v1647 = vld [vmem:[%s1639 + $0x1c] sm:$0xf]
        %v1648 = vld [vmem:[%s1639 + $0x20] sm:$0xf]
        %v1649 = vld [vmem:[%s1639 + $0x24] sm:$0xf]
        %v1650 = vld [vmem:[%s1639 + $0x28] sm:$0xf]
        %v1651 = vld [vmem:[%s1639 + $0x2c] sm:$0xf]
        %v1652 = vld [vmem:[%s1639 + $0x30] sm:$0xf]
        %v1653 = vld [vmem:[%s1639 + $0x34] sm:$0xf]
        %v1654 = vld [vmem:[%s1639 + $0x38] sm:$0xf]
        %v1655 = vld [vmem:[%s1639 + $0x3c] sm:$0xf]
        %v1672 = vunpack.c.l.b16 %v1640
        %v1673 = vunpack.c.l.b16 %v1641
        %v1674 = vunpack.c.l.b16 %v1642
        %v1675 = vunpack.c.l.b16 %v1643
        %v1676 = vunpack.c.l.b16 %v1644
        %v1677 = vunpack.c.l.b16 %v1645
        %v1678 = vunpack.c.l.b16 %v1646
        %v1679 = vunpack.c.l.b16 %v1647
        %v1680 = vunpack.c.l.b16 %v1648
        %v1681 = vunpack.c.l.b16 %v1649
        %v1682 = vunpack.c.l.b16 %v1650
        %v1683 = vunpack.c.l.b16 %v1651
        %v1684 = vunpack.c.l.b16 %v1652
        %v1685 = vunpack.c.l.b16 %v1653
        %v1686 = vunpack.c.l.b16 %v1654
        %v1687 = vunpack.c.l.b16 %v1655
        %v1688 = vpack.c.b16 %v1673, %v1672
        %v1689 = vpack.c.b16 %v1675, %v1674
        %v1690 = vpack.c.b16 %v1677, %v1676
        %v1691 = vpack.c.b16 %v1679, %v1678
        %v1692 = vpack.c.b16 %v1681, %v1680
        %v1693 = vpack.c.b16 %v1683, %v1682
        %v1694 = vpack.c.b16 %v1685, %v1684
        %v1695 = vpack.c.b16 %v1687, %v1686
        %1704 = vmatprep.subr.bf16.mxu0 0
        %1705 = vmatpush1.bf16.msra.mxu0 %v1688
        %1706 = vmatprep.subr.bf16.mxu0 0
        %1707 = vmatpush1.bf16.msra.mxu0 %v1689
        %1708 = vmatprep.subr.bf16.mxu0 0
        %1709 = vmatpush1.bf16.msra.mxu0 %v1690
        %1710 = vmatprep.subr.bf16.mxu0 0
        %1711 = vmatpush1.bf16.msra.mxu0 %v1691
        %1712 = vmatprep.subr.bf16.mxu0 0
        %1713 = vmatpush1.bf16.msra.mxu0 %v1692
        %1714 = vmatprep.subr.bf16.mxu0 0
        %1715 = vmatpush1.bf16.msra.mxu0 %v1693
        %1716 = vmatprep.subr.bf16.mxu0 0
        %1717 = vmatpush1.bf16.msra.mxu0 %v1694
        %1718 = vmatprep.subr.bf16.mxu0 0
        %1719 = vmatpush1.bf16.msra.mxu0 %v1695
        %1720 = vmatprep.subr.bf16.mxu0 0
        %1721 = vmatpush1.bf16.msra.mxu0 0
        %1722 = vmatprep.subr.bf16.mxu0 0
        %1723 = vmatpush1.bf16.msra.mxu0 0
        %1724 = vmatprep.subr.bf16.mxu0 0
        %1725 = vmatpush1.bf16.msra.mxu0 0
        %1726 = vmatprep.subr.bf16.mxu0 0
        %1727 = vmatpush1.bf16.msra.mxu0 0
        %1728 = vmatprep.subr.bf16.mxu0 0
        %1729 = vmatpush1.bf16.msra.mxu0 0
        %1730 = vmatprep.subr.bf16.mxu0 0
        %1731 = vmatpush1.bf16.msra.mxu0 0
        %1732 = vmatprep.subr.bf16.mxu0 0
        %1733 = vmatpush1.bf16.msra.mxu0 0
        %1734 = vmatprep.subr.bf16.mxu0 0
        %1735 = vmatpush1.bf16.msra.mxu0 0
        %1736 = vmatprep.mubr.bf16.mxu0 0
        %1737 = vmatmul.mubr.bf16.gmra.mrb[0].mxu0 %v850
        %v1738 = vpop.f32.mrb[0].mxu0
        %v1739 = vadd.f32 0.0, %v1738
        %v1740 = vpop.f32.mrb[0].mxu0
        %v1741 = vpop.f32.mrb[0].mxu0
        %v1742 = vadd.f32 0.0, %v1741
        %v1743 = vpop.f32.mrb[0].mxu0
        %1744 = vmatprep.mubr.bf16.mxu0 0
        %1745 = vmatmul.mubr.bf16.gmra.mrb[0].mxu0 %v851
        %v1746 = vpop.f32.mrb[0].mxu0
        %v1747 = vadd.f32 0.0, %v1746
        %v1748 = vpop.f32.mrb[0].mxu0
        %v1749 = vpop.f32.mrb[0].mxu0
        %v1750 = vadd.f32 0.0, %v1749
        %v1751 = vpop.f32.mrb[0].mxu0
        %1752 = vmatprep.mubr.bf16.mxu0 0
        %1753 = vmatmul.mubr.bf16.gmra.mrb[0].mxu0 %v852
        %v1754 = vpop.f32.mrb[0].mxu0
        %v1755 = vadd.f32 0.0, %v1754
        %v1756 = vpop.f32.mrb[0].mxu0
        %v1757 = vpop.f32.mrb[0].mxu0
        %v1758 = vadd.f32 0.0, %v1757
        %v1759 = vpop.f32.mrb[0].mxu0
        %1760 = vmatprep.mubr.bf16.mxu0 0
        %1761 = vmatmul.mubr.bf16.gmra.mrb[0].mxu0 %v853
        %v1762 = vpop.f32.mrb[0].mxu0
        %v1763 = vadd.f32 0.0, %v1762
        %v1764 = vpop.f32.mrb[0].mxu0
        %v1765 = vpop.f32.mrb[0].mxu0
        %v1766 = vadd.f32 0.0, %v1765
        %v1767 = vpop.f32.mrb[0].mxu0
        %1768 = vmatprep.mubr.bf16.mxu0 0
        %1769 = vmatmul.mubr.bf16.gmra.mrb[0].mxu0 %v854
        %v1770 = vpop.f32.mrb[0].mxu0
        %v1771 = vadd.f32 0.0, %v1770
        %v1772 = vpop.f32.mrb[0].mxu0
        %v1773 = vpop.f32.mrb[0].mxu0
        %v1774 = vadd.f32 0.0, %v1773
        %v1775 = vpop.f32.mrb[0].mxu0
        %1776 = vmatprep.mubr.bf16.mxu0 0
        %1777 = vmatmul.mubr.bf16.gmra.mrb[0].mxu0 %v855
        %v1778 = vpop.f32.mrb[0].mxu0
        %v1779 = vadd.f32 0.0, %v1778
        %v1780 = vpop.f32.mrb[0].mxu0
        %v1781 = vpop.f32.mrb[0].mxu0
        %v1782 = vadd.f32 0.0, %v1781
        %v1783 = vpop.f32.mrb[0].mxu0
        %1784 = vmatprep.mubr.bf16.mxu0 0
        %1785 = vmatmul.mubr.bf16.gmra.mrb[0].mxu0 %v856
        %v1786 = vpop.f32.mrb[0].mxu0
        %v1787 = vadd.f32 0.0, %v1786
        %v1788 = vpop.f32.mrb[0].mxu0
        %v1789 = vpop.f32.mrb[0].mxu0
        %v1790 = vadd.f32 0.0, %v1789
        %v1791 = vpop.f32.mrb[0].mxu0
        %1792 = vmatprep.mubr.bf16.mxu0 0
        %1793 = vmatmul.mubr.bf16.gmra.mrb[0].mxu0 %v1638
        %v1794 = vpop.f32.mrb[0].mxu0
        %v1795 = vadd.f32 0.0, %v1794
        %v1796 = vpop.f32.mrb[0].mxu0
        %v1797 = vpop.f32.mrb[0].mxu0
        %v1798 = vadd.f32 0.0, %v1797
        %v1799 = vpop.f32.mrb[0].mxu0
        %1800 = vdwg.mxu0
        %v1801 = vadd.f32 %v1622, %v1739
        %v1802 = vadd.f32 %v1623, %v1742
        %v1803 = vadd.f32 %v1624, %v1747
        %v1804 = vadd.f32 %v1625, %v1750
        %v1805 = vadd.f32 %v1626, %v1755
        %v1806 = vadd.f32 %v1627, %v1758
        %v1807 = vadd.f32 %v1628, %v1763
        %v1808 = vadd.f32 %v1629, %v1766
        %v1809 = vadd.f32 %v1630, %v1771
        %v1810 = vadd.f32 %v1631, %v1774
        %v1811 = vadd.f32 %v1632, %v1779
        %v1812 = vadd.f32 %v1633, %v1782
        %v1813 = vadd.f32 %v1634, %v1787
        %v1814 = vadd.f32 %v1635, %v1790
        %v1815 = vadd.f32 %v1636, %v1795
        %v1816 = vadd.f32 %v1637, %v1798
        %v1817 = vrot.slane %v499, 1
        %v1818 = vrot.slane %v500, 1
        %v1819 = vsel %vm1180, %v1817, %v1818
        %v1820 = vsel %vm1180, %v1179, %v1817
        %v1821 = vsel %vm1180, %v1818, %v1166
        %v1822 = vsel %vm1213, %v1193, 0.0
        %v1823 = vsel %vm1214, %v1192, 0.0
        %v1824 = vsel %vm1215, %v1191, 0.0
        %v1825 = vsel %vm1216, %v1190, 0.0
        %v1826 = vsel %vm1217, %v1189, 0.0
        %v1827 = vsel %vm1218, %v1188, 0.0
        %v1828 = vsel %vm1219, %v1187, 0.0
        %v1829 = vsel %vm1220, %v1186, 0.0
        %v1830 = vsel %vm1221, %v1185, 0.0
        %v1831 = vsel %vm1222, %v1184, 0.0
        %v1832 = vsel %vm1223, %v1183, 0.0
        %v1833 = vsel %vm1224, %v1182, 0.0
        %v1834 = vsel %vm1225, %v1181, 0.0
        %v1835 = vsel %vm1226, %v1820, 0.0
        %v1836 = vsel %vm1227, %v1819, 0.0
        %v1837 = vsel %vm1228, %v1821, 0.0
        %v1838 = vpack.c.bf16 %v1823, %v1822
        %v1839 = vpack.c.bf16 %v1825, %v1824
        %v1840 = vpack.c.bf16 %v1827, %v1826
        %v1841 = vpack.c.bf16 %v1829, %v1828
        %v1842 = vpack.c.bf16 %v1831, %v1830
        %v1843 = vpack.c.bf16 %v1833, %v1832
        %v1844 = vpack.c.bf16 %v1835, %v1834
        %v1845 = vpack.c.bf16 %v1837, %v1836
        %s1846 = scalar_lea.vmem %s2, 320
        %v1847 = vld [vmem:[%s1846] sm:$0xf]
        %v1848 = vld [vmem:[%s1846 + $0x4] sm:$0xf]
        %v1849 = vld [vmem:[%s1846 + $0x8] sm:$0xf]
        %v1850 = vld [vmem:[%s1846 + $0xc] sm:$0xf]
        %v1851 = vld [vmem:[%s1846 + $0x10] sm:$0xf]
        %v1852 = vld [vmem:[%s1846 + $0x14] sm:$0xf]
        %v1853 = vld [vmem:[%s1846 + $0x18] sm:$0xf]
        %v1854 = vld [vmem:[%s1846 + $0x1c] sm:$0xf]
        %v1855 = vld [vmem:[%s1846 + $0x20] sm:$0xf]
        %v1856 = vld [vmem:[%s1846 + $0x24] sm:$0xf]
        %v1857 = vld [vmem:[%s1846 + $0x28] sm:$0xf]
        %v1858 = vld [vmem:[%s1846 + $0x2c] sm:$0xf]
        %v1859 = vld [vmem:[%s1846 + $0x30] sm:$0xf]
        %v1860 = vld [vmem:[%s1846 + $0x34] sm:$0xf]
        %v1861 = vld [vmem:[%s1846 + $0x38] sm:$0xf]
        %v1862 = vld [vmem:[%s1846 + $0x3c] sm:$0xf]
        %v1879 = vunpack.c.l.b16 %v1847
        %v1880 = vunpack.c.l.b16 %v1848
        %v1881 = vunpack.c.l.b16 %v1849
        %v1882 = vunpack.c.l.b16 %v1850
        %v1883 = vunpack.c.l.b16 %v1851
        %v1884 = vunpack.c.l.b16 %v1852
        %v1885 = vunpack.c.l.b16 %v1853
        %v1886 = vunpack.c.l.b16 %v1854
        %v1887 = vunpack.c.l.b16 %v1855
        %v1888 = vunpack.c.l.b16 %v1856
        %v1889 = vunpack.c.l.b16 %v1857
        %v1890 = vunpack.c.l.b16 %v1858
        %v1891 = vunpack.c.l.b16 %v1859
        %v1892 = vunpack.c.l.b16 %v1860
        %v1893 = vunpack.c.l.b16 %v1861
        %v1894 = vunpack.c.l.b16 %v1862
        %v1895 = vpack.c.b16 %v1880, %v1879
        %v1896 = vpack.c.b16 %v1882, %v1881
        %v1897 = vpack.c.b16 %v1884, %v1883
        %v1898 = vpack.c.b16 %v1886, %v1885
        %v1899 = vpack.c.b16 %v1888, %v1887
        %v1900 = vpack.c.b16 %v1890, %v1889
        %v1901 = vpack.c.b16 %v1892, %v1891
        %v1902 = vpack.c.b16 %v1894, %v1893
        %1911 = vmatprep.subr.bf16.mxu0 0
        %1912 = vmatpush1.bf16.msra.mxu0 %v1895
        %1913 = vmatprep.subr.bf16.mxu0 0
        %1914 = vmatpush1.bf16.msra.mxu0 %v1896
        %1915 = vmatprep.subr.bf16.mxu0 0
        %1916 = vmatpush1.bf16.msra.mxu0 %v1897
        %1917 = vmatprep.subr.bf16.mxu0 0
        %1918 = vmatpush1.bf16.msra.mxu0 %v1898
        %1919 = vmatprep.subr.bf16.mxu0 0
        %1920 = vmatpush1.bf16.msra.mxu0 %v1899
        %1921 = vmatprep.subr.bf16.mxu0 0
        %1922 = vmatpush1.bf16.msra.mxu0 %v1900
        %1923 = vmatprep.subr.bf16.mxu0 0
        %1924 = vmatpush1.bf16.msra.mxu0 %v1901
        %1925 = vmatprep.subr.bf16.mxu0 0
        %1926 = vmatpush1.bf16.msra.mxu0 %v1902
        %1927 = vmatprep.subr.bf16.mxu0 0
        %1928 = vmatpush1.bf16.msra.mxu0 0
        %1929 = vmatprep.subr.bf16.mxu0 0
        %1930 = vmatpush1.bf16.msra.mxu0 0
        %1931 = vmatprep.subr.bf16.mxu0 0
        %1932 = vmatpush1.bf16.msra.mxu0 0
        %1933 = vmatprep.subr.bf16.mxu0 0
        %1934 = vmatpush1.bf16.msra.mxu0 0
        %1935 = vmatprep.subr.bf16.mxu0 0
        %1936 = vmatpush1.bf16.msra.mxu0 0
        %1937 = vmatprep.subr.bf16.mxu0 0
        %1938 = vmatpush1.bf16.msra.mxu0 0
        %1939 = vmatprep.subr.bf16.mxu0 0
        %1940 = vmatpush1.bf16.msra.mxu0 0
        %1941 = vmatprep.subr.bf16.mxu0 0
        %1942 = vmatpush1.bf16.msra.mxu0 0
        %1943 = vmatprep.mubr.bf16.mxu0 0
        %1944 = vmatmul.mubr.bf16.gmra.mrb[0].mxu0 %v1838
        %v1945 = vpop.f32.mrb[0].mxu0
        %v1946 = vadd.f32 0.0, %v1945
        %v1947 = vpop.f32.mrb[0].mxu0
        %v1948 = vpop.f32.mrb[0].mxu0
        %v1949 = vadd.f32 0.0, %v1948
        %v1950 = vpop.f32.mrb[0].mxu0
        %1951 = vmatprep.mubr.bf16.mxu0 0
        %1952 = vmatmul.mubr.bf16.gmra.mrb[0].mxu0 %v1839
        %v1953 = vpop.f32.mrb[0].mxu0
        %v1954 = vadd.f32 0.0, %v1953
        %v1955 = vpop.f32.mrb[0].mxu0
        %v1956 = vpop.f32.mrb[0].mxu0
        %v1957 = vadd.f32 0.0, %v1956
        %v1958 = vpop.f32.mrb[0].mxu0
        %1959 = vmatprep.mubr.bf16.mxu0 0
        %1960 = vmatmul.mubr.bf16.gmra.mrb[0].mxu0 %v1840
        %v1961 = vpop.f32.mrb[0].mxu0
        %v1962 = vadd.f32 0.0, %v1961
        %v1963 = vpop.f32.mrb[0].mxu0
        %v1964 = vpop.f32.mrb[0].mxu0
        %v1965 = vadd.f32 0.0, %v1964
        %v1966 = vpop.f32.mrb[0].mxu0
        %1967 = vmatprep.mubr.bf16.mxu0 0
        %1968 = vmatmul.mubr.bf16.gmra.mrb[0].mxu0 %v1841
        %v1969 = vpop.f32.mrb[0].mxu0
        %v1970 = vadd.f32 0.0, %v1969
        %v1971 = vpop.f32.mrb[0].mxu0
        %v1972 = vpop.f32.mrb[0].mxu0
        %v1973 = vadd.f32 0.0, %v1972
        %v1974 = vpop.f32.mrb[0].mxu0
        %1975 = vmatprep.mubr.bf16.mxu0 0
        %1976 = vmatmul.mubr.bf16.gmra.mrb[0].mxu0 %v1842
        %v1977 = vpop.f32.mrb[0].mxu0
        %v1978 = vadd.f32 0.0, %v1977
        %v1979 = vpop.f32.mrb[0].mxu0
        %v1980 = vpop.f32.mrb[0].mxu0
        %v1981 = vadd.f32 0.0, %v1980
        %v1982 = vpop.f32.mrb[0].mxu0
        %1983 = vmatprep.mubr.bf16.mxu0 0
        %1984 = vmatmul.mubr.bf16.gmra.mrb[0].mxu0 %v1843
        %v1985 = vpop.f32.mrb[0].mxu0
        %v1986 = vadd.f32 0.0, %v1985
        %v1987 = vpop.f32.mrb[0].mxu0
        %v1988 = vpop.f32.mrb[0].mxu0
        %v1989 = vadd.f32 0.0, %v1988
        %v1990 = vpop.f32.mrb[0].mxu0
        %1991 = vmatprep.mubr.bf16.mxu0 0
        %1992 = vmatmul.mubr.bf16.gmra.mrb[0].mxu0 %v1844
        %v1993 = vpop.f32.mrb[0].mxu0
        %v1994 = vadd.f32 0.0, %v1993
        %v1995 = vpop.f32.mrb[0].mxu0
        %v1996 = vpop.f32.mrb[0].mxu0
        %v1997 = vadd.f32 0.0, %v1996
        %v1998 = vpop.f32.mrb[0].mxu0
        %1999 = vmatprep.mubr.bf16.mxu0 0
        %2000 = vmatmul.mubr.bf16.gmra.mrb[0].mxu0 %v1845
        %v2001 = vpop.f32.mrb[0].mxu0
        %v2002 = vadd.f32 0.0, %v2001
        %v2003 = vpop.f32.mrb[0].mxu0
        %v2004 = vpop.f32.mrb[0].mxu0
        %v2005 = vadd.f32 0.0, %v2004
        %v2006 = vpop.f32.mrb[0].mxu0
        %2007 = vdwg.mxu0
        %v2008 = vadd.f32 %v1801, %v1946
        %v2009 = vadd.f32 %v1802, %v1949
        %v2010 = vadd.f32 %v1803, %v1954
        %v2011 = vadd.f32 %v1804, %v1957
        %v2012 = vadd.f32 %v1805, %v1962
        %v2013 = vadd.f32 %v1806, %v1965
        %v2014 = vadd.f32 %v1807, %v1970
        %v2015 = vadd.f32 %v1808, %v1973
        %v2016 = vadd.f32 %v1809, %v1978
        %v2017 = vadd.f32 %v1810, %v1981
        %v2018 = vadd.f32 %v1811, %v1986
        %v2019 = vadd.f32 %v1812, %v1989
        %v2020 = vadd.f32 %v1813, %v1994
        %v2021 = vadd.f32 %v1814, %v1997
        %v2022 = vadd.f32 %v1815, %v2002
        %v2023 = vadd.f32 %v1816, %v2005
        %v2024 = vrot.slane %v501, 7
        %v2025 = vrot.slane %v502, 7
        %v2026 = vsel %vm760, %v2024, %v2025
        %v2027 = vsel %vm760, %v1432, %v2024
        %v2028 = vsel %vm760, %v2025, %v748
        %v2029 = vsel %vm793, %v2028, 0.0
        %v2030 = vsel %vm794, %v771, 0.0
        %v2031 = vsel %vm795, %v770, 0.0
        %v2032 = vsel %vm796, %v769, 0.0
        %v2033 = vsel %vm797, %v768, 0.0
        %v2034 = vsel %vm798, %v767, 0.0
        %v2035 = vsel %vm799, %v766, 0.0
        %v2036 = vsel %vm800, %v765, 0.0
        %v2037 = vsel %vm801, %v764, 0.0
        %v2038 = vsel %vm802, %v763, 0.0
        %v2039 = vsel %vm803, %v762, 0.0
        %v2040 = vsel %vm804, %v761, 0.0
        %v2041 = vsel %vm805, %v1434, 0.0
        %v2042 = vsel %vm806, %v1433, 0.0
        %v2043 = vsel %vm807, %v2027, 0.0
        %v2044 = vsel %vm808, %v2026, 0.0
        %v2045 = vpack.c.bf16 %v2030, %v2029
        %v2046 = vpack.c.bf16 %v2032, %v2031
        %v2047 = vpack.c.bf16 %v2034, %v2033
        %v2048 = vpack.c.bf16 %v2036, %v2035
        %v2049 = vpack.c.bf16 %v2038, %v2037
        %v2050 = vpack.c.bf16 %v2040, %v2039
        %v2051 = vpack.c.bf16 %v2042, %v2041
        %v2052 = vpack.c.bf16 %v2044, %v2043
        %s2053 = scalar_lea.vmem %s2, 384
        %v2054 = vld [vmem:[%s2053] sm:$0xf]
        %v2055 = vld [vmem:[%s2053 + $0x4] sm:$0xf]
        %v2056 = vld [vmem:[%s2053 + $0x8] sm:$0xf]
        %v2057 = vld [vmem:[%s2053 + $0xc] sm:$0xf]
        %v2058 = vld [vmem:[%s2053 + $0x10] sm:$0xf]
        %v2059 = vld [vmem:[%s2053 + $0x14] sm:$0xf]
        %v2060 = vld [vmem:[%s2053 + $0x18] sm:$0xf]
        %v2061 = vld [vmem:[%s2053 + $0x1c] sm:$0xf]
        %v2062 = vld [vmem:[%s2053 + $0x20] sm:$0xf]
        %v2063 = vld [vmem:[%s2053 + $0x24] sm:$0xf]
        %v2064 = vld [vmem:[%s2053 + $0x28] sm:$0xf]
        %v2065 = vld [vmem:[%s2053 + $0x2c] sm:$0xf]
        %v2066 = vld [vmem:[%s2053 + $0x30] sm:$0xf]
        %v2067 = vld [vmem:[%s2053 + $0x34] sm:$0xf]
        %v2068 = vld [vmem:[%s2053 + $0x38] sm:$0xf]
        %v2069 = vld [vmem:[%s2053 + $0x3c] sm:$0xf]
        %v2086 = vunpack.c.l.b16 %v2054
        %v2087 = vunpack.c.l.b16 %v2055
        %v2088 = vunpack.c.l.b16 %v2056
        %v2089 = vunpack.c.l.b16 %v2057
        %v2090 = vunpack.c.l.b16 %v2058
        %v2091 = vunpack.c.l.b16 %v2059
        %v2092 = vunpack.c.l.b16 %v2060
        %v2093 = vunpack.c.l.b16 %v2061
        %v2094 = vunpack.c.l.b16 %v2062
        %v2095 = vunpack.c.l.b16 %v2063
        %v2096 = vunpack.c.l.b16 %v2064
        %v2097 = vunpack.c.l.b16 %v2065
        %v2098 = vunpack.c.l.b16 %v2066
        %v2099 = vunpack.c.l.b16 %v2067
        %v2100 = vunpack.c.l.b16 %v2068
        %v2101 = vunpack.c.l.b16 %v2069
        %v2102 = vpack.c.b16 %v2087, %v2086
        %v2103 = vpack.c.b16 %v2089, %v2088
        %v2104 = vpack.c.b16 %v2091, %v2090
        %v2105 = vpack.c.b16 %v2093, %v2092
        %v2106 = vpack.c.b16 %v2095, %v2094
        %v2107 = vpack.c.b16 %v2097, %v2096
        %v2108 = vpack.c.b16 %v2099, %v2098
        %v2109 = vpack.c.b16 %v2101, %v2100
        %2118 = vmatprep.subr.bf16.mxu0 0
        %2119 = vmatpush1.bf16.msra.mxu0 %v2102
        %2120 = vmatprep.subr.bf16.mxu0 0
        %2121 = vmatpush1.bf16.msra.mxu0 %v2103
        %2122 = vmatprep.subr.bf16.mxu0 0
        %2123 = vmatpush1.bf16.msra.mxu0 %v2104
        %2124 = vmatprep.subr.bf16.mxu0 0
        %2125 = vmatpush1.bf16.msra.mxu0 %v2105
        %2126 = vmatprep.subr.bf16.mxu0 0
        %2127 = vmatpush1.bf16.msra.mxu0 %v2106
        %2128 = vmatprep.subr.bf16.mxu0 0
        %2129 = vmatpush1.bf16.msra.mxu0 %v2107
        %2130 = vmatprep.subr.bf16.mxu0 0
        %2131 = vmatpush1.bf16.msra.mxu0 %v2108
        %2132 = vmatprep.subr.bf16.mxu0 0
        %2133 = vmatpush1.bf16.msra.mxu0 %v2109
        %2134 = vmatprep.subr.bf16.mxu0 0
        %2135 = vmatpush1.bf16.msra.mxu0 0
        %2136 = vmatprep.subr.bf16.mxu0 0
        %2137 = vmatpush1.bf16.msra.mxu0 0
        %2138 = vmatprep.subr.bf16.mxu0 0
        %2139 = vmatpush1.bf16.msra.mxu0 0
        %2140 = vmatprep.subr.bf16.mxu0 0
        %2141 = vmatpush1.bf16.msra.mxu0 0
        %2142 = vmatprep.subr.bf16.mxu0 0
        %2143 = vmatpush1.bf16.msra.mxu0 0
        %2144 = vmatprep.subr.bf16.mxu0 0
        %2145 = vmatpush1.bf16.msra.mxu0 0
        %2146 = vmatprep.subr.bf16.mxu0 0
        %2147 = vmatpush1.bf16.msra.mxu0 0
        %2148 = vmatprep.subr.bf16.mxu0 0
        %2149 = vmatpush1.bf16.msra.mxu0 0
        %2150 = vmatprep.mubr.bf16.mxu0 0
        %2151 = vmatmul.mubr.bf16.gmra.mrb[0].mxu0 %v2045
        %v2152 = vpop.f32.mrb[0].mxu0
        %v2153 = vadd.f32 0.0, %v2152
        %v2154 = vpop.f32.mrb[0].mxu0
        %v2155 = vpop.f32.mrb[0].mxu0
        %v2156 = vadd.f32 0.0, %v2155
        %v2157 = vpop.f32.mrb[0].mxu0
        %2158 = vmatprep.mubr.bf16.mxu0 0
        %2159 = vmatmul.mubr.bf16.gmra.mrb[0].mxu0 %v2046
        %v2160 = vpop.f32.mrb[0].mxu0
        %v2161 = vadd.f32 0.0, %v2160
        %v2162 = vpop.f32.mrb[0].mxu0
        %v2163 = vpop.f32.mrb[0].mxu0
        %v2164 = vadd.f32 0.0, %v2163
        %v2165 = vpop.f32.mrb[0].mxu0
        %2166 = vmatprep.mubr.bf16.mxu0 0
        %2167 = vmatmul.mubr.bf16.gmra.mrb[0].mxu0 %v2047
        %v2168 = vpop.f32.mrb[0].mxu0
        %v2169 = vadd.f32 0.0, %v2168
        %v2170 = vpop.f32.mrb[0].mxu0
        %v2171 = vpop.f32.mrb[0].mxu0
        %v2172 = vadd.f32 0.0, %v2171
        %v2173 = vpop.f32.mrb[0].mxu0
        %2174 = vmatprep.mubr.bf16.mxu0 0
        %2175 = vmatmul.mubr.bf16.gmra.mrb[0].mxu0 %v2048
        %v2176 = vpop.f32.mrb[0].mxu0
        %v2177 = vadd.f32 0.0, %v2176
        %v2178 = vpop.f32.mrb[0].mxu0
        %v2179 = vpop.f32.mrb[0].mxu0
        %v2180 = vadd.f32 0.0, %v2179
        %v2181 = vpop.f32.mrb[0].mxu0
        %2182 = vmatprep.mubr.bf16.mxu0 0
        %2183 = vmatmul.mubr.bf16.gmra.mrb[0].mxu0 %v2049
        %v2184 = vpop.f32.mrb[0].mxu0
        %v2185 = vadd.f32 0.0, %v2184
        %v2186 = vpop.f32.mrb[0].mxu0
        %v2187 = vpop.f32.mrb[0].mxu0
        %v2188 = vadd.f32 0.0, %v2187
        %v2189 = vpop.f32.mrb[0].mxu0
        %2190 = vmatprep.mubr.bf16.mxu0 0
        %2191 = vmatmul.mubr.bf16.gmra.mrb[0].mxu0 %v2050
        %v2192 = vpop.f32.mrb[0].mxu0
        %v2193 = vadd.f32 0.0, %v2192
        %v2194 = vpop.f32.mrb[0].mxu0
        %v2195 = vpop.f32.mrb[0].mxu0
        %v2196 = vadd.f32 0.0, %v2195
        %v2197 = vpop.f32.mrb[0].mxu0
        %2198 = vmatprep.mubr.bf16.mxu0 0
        %2199 = vmatmul.mubr.bf16.gmra.mrb[0].mxu0 %v2051
        %v2200 = vpop.f32.mrb[0].mxu0
        %v2201 = vadd.f32 0.0, %v2200
        %v2202 = vpop.f32.mrb[0].mxu0
        %v2203 = vpop.f32.mrb[0].mxu0
        %v2204 = vadd.f32 0.0, %v2203
        %v2205 = vpop.f32.mrb[0].mxu0
        %2206 = vmatprep.mubr.bf16.mxu0 0
        %2207 = vmatmul.mubr.bf16.gmra.mrb[0].mxu0 %v2052
        %v2208 = vpop.f32.mrb[0].mxu0
        %v2209 = vadd.f32 0.0, %v2208
        %v2210 = vpop.f32.mrb[0].mxu0
        %v2211 = vpop.f32.mrb[0].mxu0
        %v2212 = vadd.f32 0.0, %v2211
        %v2213 = vpop.f32.mrb[0].mxu0
        %2214 = vdwg.mxu0
        %v2215 = vadd.f32 %v2008, %v2153
        %v2216 = vadd.f32 %v2009, %v2156
        %v2217 = vadd.f32 %v2010, %v2161
        %v2218 = vadd.f32 %v2011, %v2164
        %v2219 = vadd.f32 %v2012, %v2169
        %v2220 = vadd.f32 %v2013, %v2172
        %v2221 = vadd.f32 %v2014, %v2177
        %v2222 = vadd.f32 %v2015, %v2180
        %v2223 = vadd.f32 %v2016, %v2185
        %v2224 = vadd.f32 %v2017, %v2188
        %v2225 = vadd.f32 %v2018, %v2193
        %v2226 = vadd.f32 %v2019, %v2196
        %v2227 = vadd.f32 %v2020, %v2201
        %v2228 = vadd.f32 %v2021, %v2204
        %v2229 = vadd.f32 %v2022, %v2209
        %v2230 = vadd.f32 %v2023, %v2212
        %v2231 = vpack.c.bf16 %v502, %v501
        %s2232 = scalar_lea.vmem %s2, 448
        %v2233 = vld [vmem:[%s2232] sm:$0xf]
        %v2234 = vld [vmem:[%s2232 + $0x4] sm:$0xf]
        %v2235 = vld [vmem:[%s2232 + $0x8] sm:$0xf]
        %v2236 = vld [vmem:[%s2232 + $0xc] sm:$0xf]
        %v2237 = vld [vmem:[%s2232 + $0x10] sm:$0xf]
        %v2238 = vld [vmem:[%s2232 + $0x14] sm:$0xf]
        %v2239 = vld [vmem:[%s2232 + $0x18] sm:$0xf]
        %v2240 = vld [vmem:[%s2232 + $0x1c] sm:$0xf]
        %v2241 = vld [vmem:[%s2232 + $0x20] sm:$0xf]
        %v2242 = vld [vmem:[%s2232 + $0x24] sm:$0xf]
        %v2243 = vld [vmem:[%s2232 + $0x28] sm:$0xf]
        %v2244 = vld [vmem:[%s2232 + $0x2c] sm:$0xf]
        %v2245 = vld [vmem:[%s2232 + $0x30] sm:$0xf]
        %v2246 = vld [vmem:[%s2232 + $0x34] sm:$0xf]
        %v2247 = vld [vmem:[%s2232 + $0x38] sm:$0xf]
        %v2248 = vld [vmem:[%s2232 + $0x3c] sm:$0xf]
        %v2265 = vunpack.c.l.b16 %v2233
        %v2266 = vunpack.c.l.b16 %v2234
        %v2267 = vunpack.c.l.b16 %v2235
        %v2268 = vunpack.c.l.b16 %v2236
        %v2269 = vunpack.c.l.b16 %v2237
        %v2270 = vunpack.c.l.b16 %v2238
        %v2271 = vunpack.c.l.b16 %v2239
        %v2272 = vunpack.c.l.b16 %v2240
        %v2273 = vunpack.c.l.b16 %v2241
        %v2274 = vunpack.c.l.b16 %v2242
        %v2275 = vunpack.c.l.b16 %v2243
        %v2276 = vunpack.c.l.b16 %v2244
        %v2277 = vunpack.c.l.b16 %v2245
        %v2278 = vunpack.c.l.b16 %v2246
        %v2279 = vunpack.c.l.b16 %v2247
        %v2280 = vunpack.c.l.b16 %v2248
        %v2281 = vpack.c.b16 %v2266, %v2265
        %v2282 = vpack.c.b16 %v2268, %v2267
        %v2283 = vpack.c.b16 %v2270, %v2269
        %v2284 = vpack.c.b16 %v2272, %v2271
        %v2285 = vpack.c.b16 %v2274, %v2273
        %v2286 = vpack.c.b16 %v2276, %v2275
        %v2287 = vpack.c.b16 %v2278, %v2277
        %v2288 = vpack.c.b16 %v2280, %v2279
        %2297 = vmatprep.subr.bf16.mxu0 0
        %2298 = vmatpush1.bf16.msra.mxu0 %v2281
        %2299 = vmatprep.subr.bf16.mxu0 0
        %2300 = vmatpush1.bf16.msra.mxu0 %v2282
        %2301 = vmatprep.subr.bf16.mxu0 0
        %2302 = vmatpush1.bf16.msra.mxu0 %v2283
        %2303 = vmatprep.subr.bf16.mxu0 0
        %2304 = vmatpush1.bf16.msra.mxu0 %v2284
        %2305 = vmatprep.subr.bf16.mxu0 0
        %2306 = vmatpush1.bf16.msra.mxu0 %v2285
        %2307 = vmatprep.subr.bf16.mxu0 0
        %2308 = vmatpush1.bf16.msra.mxu0 %v2286
        %2309 = vmatprep.subr.bf16.mxu0 0
        %2310 = vmatpush1.bf16.msra.mxu0 %v2287
        %2311 = vmatprep.subr.bf16.mxu0 0
        %2312 = vmatpush1.bf16.msra.mxu0 %v2288
        %2313 = vmatprep.subr.bf16.mxu0 0
        %2314 = vmatpush1.bf16.msra.mxu0 0
        %2315 = vmatprep.subr.bf16.mxu0 0
        %2316 = vmatpush1.bf16.msra.mxu0 0
        %2317 = vmatprep.subr.bf16.mxu0 0
        %2318 = vmatpush1.bf16.msra.mxu0 0
        %2319 = vmatprep.subr.bf16.mxu0 0
        %2320 = vmatpush1.bf16.msra.mxu0 0
        %2321 = vmatprep.subr.bf16.mxu0 0
        %2322 = vmatpush1.bf16.msra.mxu0 0
        %2323 = vmatprep.subr.bf16.mxu0 0
        %2324 = vmatpush1.bf16.msra.mxu0 0
        %2325 = vmatprep.subr.bf16.mxu0 0
        %2326 = vmatpush1.bf16.msra.mxu0 0
        %2327 = vmatprep.subr.bf16.mxu0 0
        %2328 = vmatpush1.bf16.msra.mxu0 0
        %2329 = vmatprep.mubr.bf16.mxu0 0
        %2330 = vmatmul.mubr.bf16.gmra.mrb[0].mxu0 %v851
        %v2331 = vpop.f32.mrb[0].mxu0
        %v2332 = vadd.f32 0.0, %v2331
        %v2333 = vpop.f32.mrb[0].mxu0
        %v2334 = vpop.f32.mrb[0].mxu0
        %v2335 = vadd.f32 0.0, %v2334
        %v2336 = vpop.f32.mrb[0].mxu0
        %2337 = vmatprep.mubr.bf16.mxu0 0
        %2338 = vmatmul.mubr.bf16.gmra.mrb[0].mxu0 %v852
        %v2339 = vpop.f32.mrb[0].mxu0
        %v2340 = vadd.f32 0.0, %v2339
        %v2341 = vpop.f32.mrb[0].mxu0
        %v2342 = vpop.f32.mrb[0].mxu0
        %v2343 = vadd.f32 0.0, %v2342
        %v2344 = vpop.f32.mrb[0].mxu0
        %2345 = vmatprep.mubr.bf16.mxu0 0
        %2346 = vmatmul.mubr.bf16.gmra.mrb[0].mxu0 %v853
        %v2347 = vpop.f32.mrb[0].mxu0
        %v2348 = vadd.f32 0.0, %v2347
        %v2349 = vpop.f32.mrb[0].mxu0
        %v2350 = vpop.f32.mrb[0].mxu0
        %v2351 = vadd.f32 0.0, %v2350
        %v2352 = vpop.f32.mrb[0].mxu0
        %2353 = vmatprep.mubr.bf16.mxu0 0
        %2354 = vmatmul.mubr.bf16.gmra.mrb[0].mxu0 %v854
        %v2355 = vpop.f32.mrb[0].mxu0
        %v2356 = vadd.f32 0.0, %v2355
        %v2357 = vpop.f32.mrb[0].mxu0
        %v2358 = vpop.f32.mrb[0].mxu0
        %v2359 = vadd.f32 0.0, %v2358
        %v2360 = vpop.f32.mrb[0].mxu0
        %2361 = vmatprep.mubr.bf16.mxu0 0
        %2362 = vmatmul.mubr.bf16.gmra.mrb[0].mxu0 %v855
        %v2363 = vpop.f32.mrb[0].mxu0
        %v2364 = vadd.f32 0.0, %v2363
        %v2365 = vpop.f32.mrb[0].mxu0
        %v2366 = vpop.f32.mrb[0].mxu0
        %v2367 = vadd.f32 0.0, %v2366
        %v2368 = vpop.f32.mrb[0].mxu0
        %2369 = vmatprep.mubr.bf16.mxu0 0
        %2370 = vmatmul.mubr.bf16.gmra.mrb[0].mxu0 %v856
        %v2371 = vpop.f32.mrb[0].mxu0
        %v2372 = vadd.f32 0.0, %v2371
        %v2373 = vpop.f32.mrb[0].mxu0
        %v2374 = vpop.f32.mrb[0].mxu0
        %v2375 = vadd.f32 0.0, %v2374
        %v2376 = vpop.f32.mrb[0].mxu0
        %2377 = vmatprep.mubr.bf16.mxu0 0
        %2378 = vmatmul.mubr.bf16.gmra.mrb[0].mxu0 %v1638
        %v2379 = vpop.f32.mrb[0].mxu0
        %v2380 = vadd.f32 0.0, %v2379
        %v2381 = vpop.f32.mrb[0].mxu0
        %v2382 = vpop.f32.mrb[0].mxu0
        %v2383 = vadd.f32 0.0, %v2382
        %v2384 = vpop.f32.mrb[0].mxu0
        %2385 = vmatprep.mubr.bf16.mxu0 0
        %2386 = vmatmul.mubr.bf16.gmra.mrb[0].mxu0 %v2231
        %v2387 = vpop.f32.mrb[0].mxu0
        %v2388 = vadd.f32 0.0, %v2387
        %v2389 = vpop.f32.mrb[0].mxu0
        %v2390 = vpop.f32.mrb[0].mxu0
        %v2391 = vadd.f32 0.0, %v2390
        %v2392 = vpop.f32.mrb[0].mxu0
        %2393 = vdwg.mxu0
        %v2394 = vadd.f32 %v2215, %v2332
        %v2395 = vadd.f32 %v2216, %v2335
        %v2396 = vadd.f32 %v2217, %v2340
        %v2397 = vadd.f32 %v2218, %v2343
        %v2398 = vadd.f32 %v2219, %v2348
        %v2399 = vadd.f32 %v2220, %v2351
        %v2400 = vadd.f32 %v2221, %v2356
        %v2401 = vadd.f32 %v2222, %v2359
        %v2402 = vadd.f32 %v2223, %v2364
        %v2403 = vadd.f32 %v2224, %v2367
        %v2404 = vadd.f32 %v2225, %v2372
        %v2405 = vadd.f32 %v2226, %v2375
        %v2406 = vadd.f32 %v2227, %v2380
        %v2407 = vadd.f32 %v2228, %v2383
        %v2408 = vadd.f32 %v2229, %v2388
        %v2409 = vadd.f32 %v2230, %v2391
        %v2410 = vrot.slane %v501, 1
        %v2411 = vrot.slane %v502, 1
        %v2412 = vsel %vm1180, %v2410, %v2411
        %v2413 = vsel %vm1180, %v1818, %v2410
        %v2414 = vsel %vm1180, %v2411, %v1168
        %v2415 = vsel %vm1213, %v1191, 0.0
        %v2416 = vsel %vm1214, %v1190, 0.0
        %v2417 = vsel %vm1215, %v1189, 0.0
        %v2418 = vsel %vm1216, %v1188, 0.0
        %v2419 = vsel %vm1217, %v1187, 0.0
        %v2420 = vsel %vm1218, %v1186, 0.0
        %v2421 = vsel %vm1219, %v1185, 0.0
        %v2422 = vsel %vm1220, %v1184, 0.0
        %v2423 = vsel %vm1221, %v1183, 0.0
        %v2424 = vsel %vm1222, %v1182, 0.0
        %v2425 = vsel %vm1223, %v1181, 0.0
        %v2426 = vsel %vm1224, %v1820, 0.0
        %v2427 = vsel %vm1225, %v1819, 0.0
        %v2428 = vsel %vm1226, %v2413, 0.0
        %v2429 = vsel %vm1227, %v2412, 0.0
        %v2430 = vsel %vm1228, %v2414, 0.0
        %v2431 = vpack.c.bf16 %v2416, %v2415
        %v2432 = vpack.c.bf16 %v2418, %v2417
        %v2433 = vpack.c.bf16 %v2420, %v2419
        %v2434 = vpack.c.bf16 %v2422, %v2421
        %v2435 = vpack.c.bf16 %v2424, %v2423
        %v2436 = vpack.c.bf16 %v2426, %v2425
        %v2437 = vpack.c.bf16 %v2428, %v2427
        %v2438 = vpack.c.bf16 %v2430, %v2429
        %s2439 = scalar_lea.vmem %s2, 512
        %v2440 = vld [vmem:[%s2439] sm:$0xf]
        %v2441 = vld [vmem:[%s2439 + $0x4] sm:$0xf]
        %v2442 = vld [vmem:[%s2439 + $0x8] sm:$0xf]
        %v2443 = vld [vmem:[%s2439 + $0xc] sm:$0xf]
        %v2444 = vld [vmem:[%s2439 + $0x10] sm:$0xf]
        %v2445 = vld [vmem:[%s2439 + $0x14] sm:$0xf]
        %v2446 = vld [vmem:[%s2439 + $0x18] sm:$0xf]
        %v2447 = vld [vmem:[%s2439 + $0x1c] sm:$0xf]
        %v2448 = vld [vmem:[%s2439 + $0x20] sm:$0xf]
        %v2449 = vld [vmem:[%s2439 + $0x24] sm:$0xf]
        %v2450 = vld [vmem:[%s2439 + $0x28] sm:$0xf]
        %v2451 = vld [vmem:[%s2439 + $0x2c] sm:$0xf]
        %v2452 = vld [vmem:[%s2439 + $0x30] sm:$0xf]
        %v2453 = vld [vmem:[%s2439 + $0x34] sm:$0xf]
        %v2454 = vld [vmem:[%s2439 + $0x38] sm:$0xf]
        %v2455 = vld [vmem:[%s2439 + $0x3c] sm:$0xf]
        %v2472 = vunpack.c.l.b16 %v2440
        %v2473 = vunpack.c.l.b16 %v2441
        %v2474 = vunpack.c.l.b16 %v2442
        %v2475 = vunpack.c.l.b16 %v2443
        %v2476 = vunpack.c.l.b16 %v2444
        %v2477 = vunpack.c.l.b16 %v2445
        %v2478 = vunpack.c.l.b16 %v2446
        %v2479 = vunpack.c.l.b16 %v2447
        %v2480 = vunpack.c.l.b16 %v2448
        %v2481 = vunpack.c.l.b16 %v2449
        %v2482 = vunpack.c.l.b16 %v2450
        %v2483 = vunpack.c.l.b16 %v2451
        %v2484 = vunpack.c.l.b16 %v2452
        %v2485 = vunpack.c.l.b16 %v2453
        %v2486 = vunpack.c.l.b16 %v2454
        %v2487 = vunpack.c.l.b16 %v2455
        %v2488 = vpack.c.b16 %v2473, %v2472
        %v2489 = vpack.c.b16 %v2475, %v2474
        %v2490 = vpack.c.b16 %v2477, %v2476
        %v2491 = vpack.c.b16 %v2479, %v2478
        %v2492 = vpack.c.b16 %v2481, %v2480
        %v2493 = vpack.c.b16 %v2483, %v2482
        %v2494 = vpack.c.b16 %v2485, %v2484
        %v2495 = vpack.c.b16 %v2487, %v2486
        %2504 = vmatprep.subr.bf16.mxu0 0
        %2505 = vmatpush1.bf16.msra.mxu0 %v2488
        %2506 = vmatprep.subr.bf16.mxu0 0
        %2507 = vmatpush1.bf16.msra.mxu0 %v2489
        %2508 = vmatprep.subr.bf16.mxu0 0
        %2509 = vmatpush1.bf16.msra.mxu0 %v2490
        %2510 = vmatprep.subr.bf16.mxu0 0
        %2511 = vmatpush1.bf16.msra.mxu0 %v2491
        %2512 = vmatprep.subr.bf16.mxu0 0
        %2513 = vmatpush1.bf16.msra.mxu0 %v2492
        %2514 = vmatprep.subr.bf16.mxu0 0
        %2515 = vmatpush1.bf16.msra.mxu0 %v2493
        %2516 = vmatprep.subr.bf16.mxu0 0
        %2517 = vmatpush1.bf16.msra.mxu0 %v2494
        %2518 = vmatprep.subr.bf16.mxu0 0
        %2519 = vmatpush1.bf16.msra.mxu0 %v2495
        %2520 = vmatprep.subr.bf16.mxu0 0
        %2521 = vmatpush1.bf16.msra.mxu0 0
        %2522 = vmatprep.subr.bf16.mxu0 0
        %2523 = vmatpush1.bf16.msra.mxu0 0
        %2524 = vmatprep.subr.bf16.mxu0 0
        %2525 = vmatpush1.bf16.msra.mxu0 0
        %2526 = vmatprep.subr.bf16.mxu0 0
        %2527 = vmatpush1.bf16.msra.mxu0 0
        %2528 = vmatprep.subr.bf16.mxu0 0
        %2529 = vmatpush1.bf16.msra.mxu0 0
        %2530 = vmatprep.subr.bf16.mxu0 0
        %2531 = vmatpush1.bf16.msra.mxu0 0
        %2532 = vmatprep.subr.bf16.mxu0 0
        %2533 = vmatpush1.bf16.msra.mxu0 0
        %2534 = vmatprep.subr.bf16.mxu0 0
        %2535 = vmatpush1.bf16.msra.mxu0 0
        %2536 = vmatprep.mubr.bf16.mxu0 0
        %2537 = vmatmul.mubr.bf16.gmra.mrb[0].mxu0 %v2431
        %v2538 = vpop.f32.mrb[0].mxu0
        %v2539 = vadd.f32 0.0, %v2538
        %v2540 = vpop.f32.mrb[0].mxu0
        %v2541 = vpop.f32.mrb[0].mxu0
        %v2542 = vadd.f32 0.0, %v2541
        %v2543 = vpop.f32.mrb[0].mxu0
        %2544 = vmatprep.mubr.bf16.mxu0 0
        %2545 = vmatmul.mubr.bf16.gmra.mrb[0].mxu0 %v2432
        %v2546 = vpop.f32.mrb[0].mxu0
        %v2547 = vadd.f32 0.0, %v2546
        %v2548 = vpop.f32.mrb[0].mxu0
        %v2549 = vpop.f32.mrb[0].mxu0
        %v2550 = vadd.f32 0.0, %v2549
        %v2551 = vpop.f32.mrb[0].mxu0
        %2552 = vmatprep.mubr.bf16.mxu0 0
        %2553 = vmatmul.mubr.bf16.gmra.mrb[0].mxu0 %v2433
        %v2554 = vpop.f32.mrb[0].mxu0
        %v2555 = vadd.f32 0.0, %v2554
        %v2556 = vpop.f32.mrb[0].mxu0
        %v2557 = vpop.f32.mrb[0].mxu0
        %v2558 = vadd.f32 0.0, %v2557
        %v2559 = vpop.f32.mrb[0].mxu0
        %2560 = vmatprep.mubr.bf16.mxu0 0
        %2561 = vmatmul.mubr.bf16.gmra.mrb[0].mxu0 %v2434
        %v2562 = vpop.f32.mrb[0].mxu0
        %v2563 = vadd.f32 0.0, %v2562
        %v2564 = vpop.f32.mrb[0].mxu0
        %v2565 = vpop.f32.mrb[0].mxu0
        %v2566 = vadd.f32 0.0, %v2565
        %v2567 = vpop.f32.mrb[0].mxu0
        %2568 = vmatprep.mubr.bf16.mxu0 0
        %2569 = vmatmul.mubr.bf16.gmra.mrb[0].mxu0 %v2435
        %v2570 = vpop.f32.mrb[0].mxu0
        %v2571 = vadd.f32 0.0, %v2570
        %v2572 = vpop.f32.mrb[0].mxu0
        %v2573 = vpop.f32.mrb[0].mxu0
        %v2574 = vadd.f32 0.0, %v2573
        %v2575 = vpop.f32.mrb[0].mxu0
        %2576 = vmatprep.mubr.bf16.mxu0 0
        %2577 = vmatmul.mubr.bf16.gmra.mrb[0].mxu0 %v2436
        %v2578 = vpop.f32.mrb[0].mxu0
        %v2579 = vadd.f32 0.0, %v2578
        %v2580 = vpop.f32.mrb[0].mxu0
        %v2581 = vpop.f32.mrb[0].mxu0
        %v2582 = vadd.f32 0.0, %v2581
        %v2583 = vpop.f32.mrb[0].mxu0
        %2584 = vmatprep.mubr.bf16.mxu0 0
        %2585 = vmatmul.mubr.bf16.gmra.mrb[0].mxu0 %v2437
        %v2586 = vpop.f32.mrb[0].mxu0
        %v2587 = vadd.f32 0.0, %v2586
        %v2588 = vpop.f32.mrb[0].mxu0
        %v2589 = vpop.f32.mrb[0].mxu0
        %v2590 = vadd.f32 0.0, %v2589
        %v2591 = vpop.f32.mrb[0].mxu0
        %2592 = vmatprep.mubr.bf16.mxu0 0
        %2593 = vmatmul.mubr.bf16.gmra.mrb[0].mxu0 %v2438
        %v2594 = vpop.f32.mrb[0].mxu0
        %v2595 = vadd.f32 0.0, %v2594
        %v2596 = vpop.f32.mrb[0].mxu0
        %v2597 = vpop.f32.mrb[0].mxu0
        %v2598 = vadd.f32 0.0, %v2597
        %v2599 = vpop.f32.mrb[0].mxu0
        %2600 = vdwg.mxu0
        %v2601 = vadd.f32 %v2394, %v2539
        %v2602 = vadd.f32 %v2395, %v2542
        %v2603 = vadd.f32 %v2396, %v2547
        %v2604 = vadd.f32 %v2397, %v2550
        %v2605 = vadd.f32 %v2398, %v2555
        %v2606 = vadd.f32 %v2399, %v2558
        %v2607 = vadd.f32 %v2400, %v2563
        %v2608 = vadd.f32 %v2401, %v2566
        %v2609 = vadd.f32 %v2402, %v2571
        %v2610 = vadd.f32 %v2403, %v2574
        %v2611 = vadd.f32 %v2404, %v2579
        %v2612 = vadd.f32 %v2405, %v2582
        %v2613 = vadd.f32 %v2406, %v2587
        %v2614 = vadd.f32 %v2407, %v2590
        %v2615 = vadd.f32 %v2408, %v2595
        %v2616 = vadd.f32 %v2409, %v2598
        %v2617 = vmax.f32 %v2601, 0.0
        %v2618 = vmax.f32 %v2602, 0.0
        %v2619 = vmax.f32 %v2603, 0.0
        %v2620 = vmax.f32 %v2604, 0.0
        %v2621 = vmax.f32 %v2605, 0.0
        %v2622 = vmax.f32 %v2606, 0.0
        %v2623 = vmax.f32 %v2607, 0.0
        %v2624 = vmax.f32 %v2608, 0.0
        %v2625 = vmax.f32 %v2609, 0.0
        %v2626 = vmax.f32 %v2610, 0.0
        %v2627 = vmax.f32 %v2611, 0.0
        %v2628 = vmax.f32 %v2612, 0.0
        %v2629 = vmax.f32 %v2613, 0.0
        %v2630 = vmax.f32 %v2614, 0.0
        %v2631 = vmax.f32 %v2615, 0.0
        %v2632 = vmax.f32 %v2616, 0.0
        %v2633 = vpack.c.bf16 %v2618, %v2617
        %v2634 = vpack.c.bf16 %v2620, %v2619
        %v2635 = vpack.c.bf16 %v2622, %v2621
        %v2636 = vpack.c.bf16 %v2624, %v2623
        %v2637 = vpack.c.bf16 %v2626, %v2625
        %v2638 = vpack.c.bf16 %v2628, %v2627
        %v2639 = vpack.c.bf16 %v2630, %v2629
        %v2640 = vpack.c.bf16 %v2632, %v2631
        %v2641 = vld [vmem:[%s3] sm:$0xf]
        %v2642 = vld [vmem:[%s3 + $0x4] sm:$0xf]
        %v2643 = vld [vmem:[%s3 + $0x8] sm:$0xf]
        %v2644 = vld [vmem:[%s3 + $0xc] sm:$0xf]
        %v2645 = vld [vmem:[%s3 + $0x10] sm:$0xf]
        %v2646 = vld [vmem:[%s3 + $0x14] sm:$0xf]
        %v2647 = vld [vmem:[%s3 + $0x18] sm:$0xf]
        %v2648 = vld [vmem:[%s3 + $0x1c] sm:$0xf]
        %v2649 = vld [vmem:[%s3 + $0x20] sm:$0xf]
        %v2650 = vld [vmem:[%s3 + $0x24] sm:$0xf]
        %v2651 = vld [vmem:[%s3 + $0x28] sm:$0xf]
        %v2652 = vld [vmem:[%s3 + $0x2c] sm:$0xf]
        %v2653 = vld [vmem:[%s3 + $0x30] sm:$0xf]
        %v2654 = vld [vmem:[%s3 + $0x34] sm:$0xf]
        %v2655 = vld [vmem:[%s3 + $0x38] sm:$0xf]
        %v2656 = vld [vmem:[%s3 + $0x3c] sm:$0xf]
        %v2657 = vld [vmem:[%s223 + $0x8] sm:$0xf]
        %v2658 = vld [vmem:[%s223 + $0xc] sm:$0xf]
        %v2659 = vld [vmem:[%s223 + $0x10] sm:$0xf]
        %v2660 = vld [vmem:[%s223 + $0x14] sm:$0xf]
        %v2661 = vld [vmem:[%s223 + $0x18] sm:$0xf]
        %v2662 = vld [vmem:[%s223 + $0x1c] sm:$0xf]
        %v2663 = vld [vmem:[%s223 + $0x20] sm:$0xf]
        %v2664 = vld [vmem:[%s223 + $0x24] sm:$0xf]
        %v2665 = vld [vmem:[%s223 + $0x28] sm:$0xf]
        %v2666 = vld [vmem:[%s223 + $0x2c] sm:$0xf]
        %v2667 = vld [vmem:[%s223 + $0x30] sm:$0xf]
        %v2668 = vld [vmem:[%s223 + $0x34] sm:$0xf]
        %v2669 = vld [vmem:[%s223 + $0x38] sm:$0xf]
        %v2670 = vld [vmem:[%s223 + $0x3c] sm:$0xf]
        %v2671 = vld [vmem:[%s223 + $0x40] sm:$0xf]
        %v2672 = vld [vmem:[%s223 + $0x44] sm:$0xf]
        %v2673 = vunpack.c.l.bf16 %v2657
        %v2674 = vunpack.c.l.bf16 %v2658
        %v2675 = vunpack.c.l.bf16 %v2659
        %v2676 = vunpack.c.l.bf16 %v2660
        %v2677 = vunpack.c.l.bf16 %v2661
        %v2678 = vunpack.c.l.bf16 %v2662
        %v2679 = vunpack.c.l.bf16 %v2663
        %v2680 = vunpack.c.l.bf16 %v2664
        %v2681 = vunpack.c.l.bf16 %v2665
        %v2682 = vunpack.c.l.bf16 %v2666
        %v2683 = vunpack.c.l.bf16 %v2667
        %v2684 = vunpack.c.l.bf16 %v2668
        %v2685 = vunpack.c.l.bf16 %v2669
        %v2686 = vunpack.c.l.bf16 %v2670
        %v2687 = vunpack.c.l.bf16 %v2671
        %v2688 = vunpack.c.l.bf16 %v2672
        %v2705 = vunpack.c.l.b16 %v2641
        %v2706 = vunpack.c.l.b16 %v2642
        %v2707 = vunpack.c.l.b16 %v2643
        %v2708 = vunpack.c.l.b16 %v2644
        %v2709 = vunpack.c.l.b16 %v2645
        %v2710 = vunpack.c.l.b16 %v2646
        %v2711 = vunpack.c.l.b16 %v2647
        %v2712 = vunpack.c.l.b16 %v2648
        %v2713 = vunpack.c.l.b16 %v2649
        %v2714 = vunpack.c.l.b16 %v2650
        %v2715 = vunpack.c.l.b16 %v2651
        %v2716 = vunpack.c.l.b16 %v2652
        %v2717 = vunpack.c.l.b16 %v2653
        %v2718 = vunpack.c.l.b16 %v2654
        %v2719 = vunpack.c.l.b16 %v2655
        %v2720 = vunpack.c.l.b16 %v2656
        %v2721 = vpack.c.b16 %v2706, %v2705
        %v2722 = vpack.c.b16 %v2708, %v2707
        %v2723 = vpack.c.b16 %v2710, %v2709
        %v2724 = vpack.c.b16 %v2712, %v2711
        %v2725 = vpack.c.b16 %v2714, %v2713
        %v2726 = vpack.c.b16 %v2716, %v2715
        %v2727 = vpack.c.b16 %v2718, %v2717
        %v2728 = vpack.c.b16 %v2720, %v2719
        %2737 = vmatprep.subr.bf16.mxu0 0
        %2738 = vmatpush1.bf16.msra.mxu0 %v2721
        %2739 = vmatprep.subr.bf16.mxu0 0
        %2740 = vmatpush1.bf16.msra.mxu0 %v2722
        %2741 = vmatprep.subr.bf16.mxu0 0
        %2742 = vmatpush1.bf16.msra.mxu0 %v2723
        %2743 = vmatprep.subr.bf16.mxu0 0
        %2744 = vmatpush1.bf16.msra.mxu0 %v2724
        %2745 = vmatprep.subr.bf16.mxu0 0
        %2746 = vmatpush1.bf16.msra.mxu0 %v2725
        %2747 = vmatprep.subr.bf16.mxu0 0
        %2748 = vmatpush1.bf16.msra.mxu0 %v2726
        %2749 = vmatprep.subr.bf16.mxu0 0
        %2750 = vmatpush1.bf16.msra.mxu0 %v2727
        %2751 = vmatprep.subr.bf16.mxu0 0
        %2752 = vmatpush1.bf16.msra.mxu0 %v2728
        %2753 = vmatprep.subr.bf16.mxu0 0
        %2754 = vmatpush1.bf16.msra.mxu0 0
        %2755 = vmatprep.subr.bf16.mxu0 0
        %2756 = vmatpush1.bf16.msra.mxu0 0
        %2757 = vmatprep.subr.bf16.mxu0 0
        %2758 = vmatpush1.bf16.msra.mxu0 0
        %2759 = vmatprep.subr.bf16.mxu0 0
        %2760 = vmatpush1.bf16.msra.mxu0 0
        %2761 = vmatprep.subr.bf16.mxu0 0
        %2762 = vmatpush1.bf16.msra.mxu0 0
        %2763 = vmatprep.subr.bf16.mxu0 0
        %2764 = vmatpush1.bf16.msra.mxu0 0
        %2765 = vmatprep.subr.bf16.mxu0 0
        %2766 = vmatpush1.bf16.msra.mxu0 0
        %2767 = vmatprep.subr.bf16.mxu0 0
        %2768 = vmatpush1.bf16.msra.mxu0 0
        %2769 = vmatprep.mubr.bf16.mxu0 0
        %2770 = vmatmul.mubr.bf16.gmra.mrb[0].mxu0 %v2633
        %v2771 = vpop.f32.mrb[0].mxu0
        %v2772 = vadd.f32 %v2673, %v2771
        %v2773 = vpop.f32.mrb[0].mxu0
        %v2774 = vpop.f32.mrb[0].mxu0
        %v2775 = vadd.f32 %v2674, %v2774
        %v2776 = vpop.f32.mrb[0].mxu0
        %2777 = vmatprep.mubr.bf16.mxu0 0
        %2778 = vmatmul.mubr.bf16.gmra.mrb[0].mxu0 %v2634
        %v2779 = vpop.f32.mrb[0].mxu0
        %v2780 = vadd.f32 %v2675, %v2779
        %v2781 = vpop.f32.mrb[0].mxu0
        %v2782 = vpop.f32.mrb[0].mxu0
        %v2783 = vadd.f32 %v2676, %v2782
        %v2784 = vpop.f32.mrb[0].mxu0
        %2785 = vmatprep.mubr.bf16.mxu0 0
        %2786 = vmatmul.mubr.bf16.gmra.mrb[0].mxu0 %v2635
        %v2787 = vpop.f32.mrb[0].mxu0
        %v2788 = vadd.f32 %v2677, %v2787
        %v2789 = vpop.f32.mrb[0].mxu0
        %v2790 = vpop.f32.mrb[0].mxu0
        %v2791 = vadd.f32 %v2678, %v2790
        %v2792 = vpop.f32.mrb[0].mxu0
        %2793 = vmatprep.mubr.bf16.mxu0 0
        %2794 = vmatmul.mubr.bf16.gmra.mrb[0].mxu0 %v2636
        %v2795 = vpop.f32.mrb[0].mxu0
        %v2796 = vadd.f32 %v2679, %v2795
        %v2797 = vpop.f32.mrb[0].mxu0
        %v2798 = vpop.f32.mrb[0].mxu0
        %v2799 = vadd.f32 %v2680, %v2798
        %v2800 = vpop.f32.mrb[0].mxu0
        %2801 = vmatprep.mubr.bf16.mxu0 0
        %2802 = vmatmul.mubr.bf16.gmra.mrb[0].mxu0 %v2637
        %v2803 = vpop.f32.mrb[0].mxu0
        %v2804 = vadd.f32 %v2681, %v2803
        %v2805 = vpop.f32.mrb[0].mxu0
        %v2806 = vpop.f32.mrb[0].mxu0
        %v2807 = vadd.f32 %v2682, %v2806
        %v2808 = vpop.f32.mrb[0].mxu0
        %2809 = vmatprep.mubr.bf16.mxu0 0
        %2810 = vmatmul.mubr.bf16.gmra.mrb[0].mxu0 %v2638
        %v2811 = vpop.f32.mrb[0].mxu0
        %v2812 = vadd.f32 %v2683, %v2811
        %v2813 = vpop.f32.mrb[0].mxu0
        %v2814 = vpop.f32.mrb[0].mxu0
        %v2815 = vadd.f32 %v2684, %v2814
        %v2816 = vpop.f32.mrb[0].mxu0
        %2817 = vmatprep.mubr.bf16.mxu0 0
        %2818 = vmatmul.mubr.bf16.gmra.mrb[0].mxu0 %v2639
        %v2819 = vpop.f32.mrb[0].mxu0
        %v2820 = vadd.f32 %v2685, %v2819
        %v2821 = vpop.f32.mrb[0].mxu0
        %v2822 = vpop.f32.mrb[0].mxu0
        %v2823 = vadd.f32 %v2686, %v2822
        %v2824 = vpop.f32.mrb[0].mxu0
        %2825 = vmatprep.mubr.bf16.mxu0 0
        %2826 = vmatmul.mubr.bf16.gmra.mrb[0].mxu0 %v2640
        %v2827 = vpop.f32.mrb[0].mxu0
        %v2828 = vadd.f32 %v2687, %v2827
        %v2829 = vpop.f32.mrb[0].mxu0
        %v2830 = vpop.f32.mrb[0].mxu0
        %v2831 = vadd.f32 %v2688, %v2830
        %v2832 = vpop.f32.mrb[0].mxu0
        %2833 = vdwg.mxu0
        %v2834 = vmax.f32 %v2772, 0.0
        %v2835 = vmax.f32 %v2775, 0.0
        %v2836 = vmax.f32 %v2780, 0.0
        %v2837 = vmax.f32 %v2783, 0.0
        %v2838 = vmax.f32 %v2788, 0.0
        %v2839 = vmax.f32 %v2791, 0.0
        %v2840 = vmax.f32 %v2796, 0.0
        %v2841 = vmax.f32 %v2799, 0.0
        %v2842 = vmax.f32 %v2804, 0.0
        %v2843 = vmax.f32 %v2807, 0.0
        %v2844 = vmax.f32 %v2812, 0.0
        %v2845 = vmax.f32 %v2815, 0.0
        %v2846 = vmax.f32 %v2820, 0.0
        %v2847 = vmax.f32 %v2823, 0.0
        %v2848 = vmax.f32 %v2828, 0.0
        %v2849 = vmax.f32 %v2831, 0.0
        %2850 = vst [vmem:[%s214] sm:$0xff] %v2834
        %2851 = vst [vmem:[%s214 + $0x8] sm:$0xff] %v2835
        %2852 = vst [vmem:[%s214 + $0x10] sm:$0xff] %v2836
        %2853 = vst [vmem:[%s214 + $0x18] sm:$0xff] %v2837
        %2854 = vst [vmem:[%s214 + $0x20] sm:$0xff] %v2838
        %2855 = vst [vmem:[%s214 + $0x28] sm:$0xff] %v2839
        %2856 = vst [vmem:[%s214 + $0x30] sm:$0xff] %v2840
        %2857 = vst [vmem:[%s214 + $0x38] sm:$0xff] %v2841
        %2858 = vst [vmem:[%s214 + $0x40] sm:$0xff] %v2842
        %2859 = vst [vmem:[%s214 + $0x48] sm:$0xff] %v2843
        %2860 = vst [vmem:[%s214 + $0x50] sm:$0xff] %v2844
        %2861 = vst [vmem:[%s214 + $0x58] sm:$0xff] %v2845
        %2862 = vst [vmem:[%s214 + $0x60] sm:$0xff] %v2846
        %2863 = vst [vmem:[%s214 + $0x68] sm:$0xff] %v2847
        %2864 = vst [vmem:[%s214 + $0x70] sm:$0xff] %v2848
        %2865 = vst [vmem:[%s214 + $0x78] sm:$0xff] %v2849
        %s2866 = sand.u32 %s131, 1
        %s2867 = scalar_lea.sflag [#allocation3], %s2866
        %s2868 = sand.u32 %s131, 1
        %s2869 = smul.addr %s2868, 128
        %s2870 = scalar_lea.vmem [#allocation2], %s2869
        // Predicated region
        $region37: #{bottleneck_forward.1} parent=35 // pred_check
          %p2871 = pneg %p141
        $region38: #{bottleneck_forward.1} parent=35 // pred_check_branch
          %2873 = sbr.rel (%p2871) target = $region40
        $region39: #{bottleneck_forward.1} parent=35 // pred_region
          %s2874 = smul.u32 16, %s23
          %s2876 = ssub.s32 2048, 2048
          %2877 = vsyncadd %s2867, %s2876
          %s2878 = smul.addr %s22, 32
          %s2879 = sadd.s32 %s2874, %s2878
          %s2880 = smul.addr %s2879, 128
          %s2881 = scalar_lea.hbm %s4, %s2880
          %s2882 = sshll.u32 %s2870, 4
          %s2883 = int_to_ptr.vmem [resolvable:$true] %s2882
          %2888 = dma.vmem_to_hbm [thread:$0]  %s2883, 2048, %s2881, %s2867, 128, 128, 8
        $region40: #{bottleneck_forward.1} parent=35 // pred_fallthru
          _
      $region36: #{bottleneck_forward.1} parent=5 // pred_fallthru
        _
      %p2889 = scmp.le.s32.totalorder 2, %s13
      // Predicated region
      $region41: #{bottleneck_forward.1} parent=5 // pred_check
        %p2890 = pneg %p2889
      $region42: #{bottleneck_forward.1} parent=5 // pred_check_branch
        %2892 = sbr.rel (%p2890) target = $region44
      $region43: #{bottleneck_forward.1} parent=5 // pred_region
        %s2893 = ssub.s32 %s13, 2
        // Predicated region
        $region45: #{bottleneck_forward.1} parent=43 // pred_check
          %p2894 = pneg %p147
        $region46: #{bottleneck_forward.1} parent=43 // pred_check_branch
          %2896 = sbr.rel (%p2894) target = $region48
        $region47: #{bottleneck_forward.1} parent=43 // pred_region
          %s2897 = sand.u32 %s132, 1
          %s2898 = scalar_lea.sflag [#allocation3], %s2897
          %s2899 = sand.u32 %s132, 1
          %s2900 = smul.addr %s2899, 128
          %s2901 = scalar_lea.vmem [#allocation2], %s2900
          %2902 = dma.done %s2898, 2048
        $region48: #{bottleneck_forward.1} parent=43 // pred_fallthru
          _
      $region44: #{bottleneck_forward.1} parent=5 // pred_fallthru
        _
    $region6: #{bottleneck_forward.1} parent=1 // loop_footer
      %s17 = sadd.s32 1, %s13
    $region7: #{bottleneck_forward.1} parent=1 // loop_footer_branch
      %12 = sbr.rel target = $region3
    $region8: #{bottleneck_forward.1} parent=1 // loop_exit
      _
    %2903 = vsyncpa [#allocation3], 1
    %s2904 = scalar_lea.sflag [#allocation3], 1
    %2905 = vsyncpa %s2904, 1

</llo_original>
